<compile_context>
chip_gen: v6e
topology: v6e:2x2x1
jax: 0.10.0
libtpu: 0.0.40
codegen_flags: <defaults>
</compile_context>

<pallas_src>
import functools

import jax
import jax.numpy as jnp
from jax import lax
from jax.experimental import pallas as pl
from jax.experimental.pallas import tpu as pltpu


def _round_up(x, m):
    return (x + m - 1) // m * m


def _gelu_exact(x):
    # nn.GELU() default = exact (erf) formulation; erf runs on the EUP slot.
    return 0.5 * x * (1.0 + lax.erf(x * (1.0 / jnp.sqrt(2.0).astype(x.dtype))))


def next_block_kernel(x_ref, dww_ref, dwb_ref, w1_ref, b1_ref, w2_ref, b2_ref,
                      out_ref, pad_ref, *, W, HWP, C, LPAD, RPAD, eps):
    # ---- build the zero-halo'd image in VMEM scratch (all slices lane-aligned) ----
    xv = x_ref[0].astype(jnp.float32)                       # (C, HWP), cast ONCE
    pad_ref[:, :LPAD] = jnp.zeros((C, LPAD), jnp.float32)
    pad_ref[:, LPAD + HWP:LPAD + HWP + RPAD] = jnp.zeros((C, RPAD), jnp.float32)
    pad_ref[:, LPAD:LPAD + HWP] = xv
    xp = pad_ref[...]                                       # single load of padded image

    # Horizontal validity only: vertical out-of-range taps land in the zero halo,
    # so the h-mask is mathematically redundant and dropped.
    lane = lax.broadcasted_iota(jnp.int32, (1, HWP), 1)
    w_idx = lane % W

    dww = dww_ref[...].astype(jnp.float32)                  # (C, 49)

    # ---- depthwise 7x7 conv: 7 independent per-ix partial sums, masked once each ----
    partials = []
    for ix in range(7):
        ox = ix - 3
        p_ix = None
        for iy in range(7):
            oy = iy - 3
            start = LPAD + oy * W + ox                      # static in-register slice
            win = xp[:, start:start + HWP]                  # (C, HWP)
            tap = dww[:, iy * 7 + ix:iy * 7 + ix + 1]       # (C, 1)
            term = win * tap
            p_ix = term if p_ix is None else p_ix + term
        w_ok = jnp.logical_and(w_idx + ox >= 0, w_idx + ox < W)   # (1, HWP)
        partials.append(jnp.where(w_ok, p_ix, 0.0))
    # tree-sum the 7 masked partials (keeps independent VALU chains)
    while len(partials) > 1:
        nxt = [partials[i] + partials[i + 1] for i in range(0, len(partials) - 1, 2)]
        if len(partials) % 2:
            nxt.append(partials[-1])
        partials = nxt
    acc = partials[0] + dwb_ref[...].astype(jnp.float32)    # (C, HWP) + (C,1)

    # ---- LayerNorm over the channel axis (affine folded into w1/b1 on host) ----
    mu = jnp.mean(acc, axis=0, keepdims=True)               # (1, HWP)
    var = jnp.mean((acc - mu) ** 2, axis=0, keepdims=True)
    xn = (acc - mu) * lax.rsqrt(var + eps)

    # ---- pointwise MLP on the MXU, bf16 operands / f32 accumulation ----
    hdn = jnp.dot(w1_ref[...], xn.astype(jnp.bfloat16),
                  preferred_element_type=jnp.float32)       # (4C, HWP)
    hdn = _gelu_exact(hdn + b1_ref[...])
    y = jnp.dot(w2_ref[...], hdn.astype(jnp.bfloat16),
                preferred_element_type=jnp.float32)         # (C, HWP)
    y = y + b2_ref[...]

    # ---- residual (gamma already folded into w2/b2) ----
    out_ref[0] = (xv + y).astype(out_ref.dtype)


def next_block(x_nchw, params, eps=1e-6):
    """x_nchw: (B, C, H, W) like PyTorch.  Returns (B, C, H, W)."""
    dww, dwb, lng, lnb, w1, b1, w2, b2, gamma = params
    B, C, H, W = x_nchw.shape
    HW = H * W
    HWP = _round_up(HW, 128)                    # lane-dense output / MXU-N
    LPAD = _round_up(3 * W + 3, 128)            # lane-aligned left halo
    RPAD = _round_up(3 * W + 3 + (HWP - HW), 128)

    x_flat = x_nchw.reshape(B, C, HW)           # free reshape
    if HWP != HW:
        x_flat = jnp.pad(x_flat, ((0, 0), (0, 0), (0, HWP - HW)))

    # Fold the LayerNorm affine into pw_conv1 and the layer-scale into pw_conv2
    # (exact algebra), and pre-cast the matmul weights to bf16 for the MXU.
    lng_v = lng.reshape(C).astype(jnp.float32)
    lnb_v = lnb.reshape(C).astype(jnp.float32)
    gamma_v = gamma.reshape(C).astype(jnp.float32)
    w1f = (w1 * lng_v[None, :]).astype(jnp.bfloat16)                      # (4C, C)
    b1f = (b1.reshape(4 * C) + w1 @ lnb_v).reshape(4 * C, 1).astype(jnp.float32)
    w2f = (gamma_v[:, None] * w2).astype(jnp.bfloat16)                    # (C, 4C)
    b2f = (gamma_v * b2.reshape(C)).reshape(C, 1).astype(jnp.float32)

    kernel = functools.partial(next_block_kernel, W=W, HWP=HWP, C=C,
                               LPAD=LPAD, RPAD=RPAD, eps=eps)

    out_flat = pl.pallas_call(
        kernel,
        out_shape=jax.ShapeDtypeStruct((B, C, HWP), x_nchw.dtype),
        grid_spec=pltpu.PrefetchScalarGridSpec(
            num_scalar_prefetch=0,
            grid=(B,),
            in_specs=[
                pl.BlockSpec((1, C, HWP), lambda b: (b, 0, 0)),   # x (flat spatial)
                pl.BlockSpec((C, 49), lambda b: (0, 0)),          # dw weight
                pl.BlockSpec((C, 1), lambda b: (0, 0)),           # dw bias
                pl.BlockSpec((4 * C, C), lambda b: (0, 0)),       # w1' (bf16, LN-folded)
                pl.BlockSpec((4 * C, 1), lambda b: (0, 0)),       # b1'
                pl.BlockSpec((C, 4 * C), lambda b: (0, 0)),       # w2' (bf16, gamma-folded)
                pl.BlockSpec((C, 1), lambda b: (0, 0)),           # b2'
            ],
            out_specs=pl.BlockSpec((1, C, HWP), lambda b: (b, 0, 0)),
            scratch_shapes=[pltpu.VMEM((C, LPAD + HWP + RPAD), jnp.float32)],
        ),
        compiler_params=pltpu.CompilerParams(
            dimension_semantics=("parallel",),
            vmem_limit_bytes=32 * 1024 * 1024),
    )(x_flat, dww, dwb, w1f, b1f, w2f, b2f)

    return out_flat[:, :, :HW].reshape(B, C, H, W)   # free reshape back to NCHW


def init_params(key, C, layer_scale=1000000.0):
    """Synthetic parameters; shapes mirror the PyTorch module.

    Mapping from PyTorch: dw_conv.weight (C,1,7,7) -> (C,49);
    Linear weights stay in (out, in) layout; per-channel vectors are (C,1).
    """
    k = jax.random.split(key, 4)
    dww = jax.random.normal(k[0], (C, 49), jnp.float32) * 0.02
    dwb = jax.random.normal(k[1], (C, 1), jnp.float32) * 0.02
    lng = jnp.ones((C, 1), jnp.float32)            # LayerNorm weight
    lnb = jnp.zeros((C, 1), jnp.float32)           # LayerNorm bias
    w1 = jax.random.normal(k[2], (4 * C, C), jnp.float32) * 0.02
    b1 = jnp.zeros((4 * C, 1), jnp.float32)
    w2 = jax.random.normal(k[3], (C, 4 * C), jnp.float32) * 0.02
    b2 = jnp.zeros((C, 1), jnp.float32)
    gamma = layer_scale * jnp.ones((C, 1), jnp.float32)
    return (dww, dwb, lng, lnb, w1, b1, w2, b2, gamma)


def next_block_ref(x, params, eps=1e-6):
    """Pure-JAX reference (NCHW in / NCHW out) for the numerical self-check."""
    dww, dwb, lng, lnb, w1, b1, w2, b2, gamma = params
    B, C, H, W = x.shape
    xp = jnp.pad(x, ((0, 0), (0, 0), (3, 3), (3, 3)))
    acc = jnp.zeros_like(x)
    for ky in range(7):
        for kx in range(7):
            acc = acc + xp[:, :, ky:ky + H, kx:kx + W] * dww[:, ky * 7 + kx].reshape(1, C, 1, 1)
    acc = acc + dwb.reshape(1, C, 1, 1)
    t = jnp.transpose(acc, (0, 2, 3, 1))                       # NHWC
    mu = t.mean(-1, keepdims=True)
    var = ((t - mu) ** 2).mean(-1, keepdims=True)
    t = (t - mu) * lax.rsqrt(var + eps) * lng.reshape(C) + lnb.reshape(C)
    hdn = jnp.einsum("bhwc,oc->bhwo", t, w1,
                     precision=lax.Precision.HIGHEST) + b1.reshape(4 * C)
    hdn = _gelu_exact(hdn)
    y = jnp.einsum("bhwo,co->bhwc", hdn, w2,
                   precision=lax.Precision.HIGHEST) + b2.reshape(C)
    y = y * gamma.reshape(C)
    return x + jnp.transpose(y, (0, 3, 1, 2))


if __name__ == "__main__":
    B, C, H, W = 2, 4, 16, 16
    key = jax.random.PRNGKey(0)
    kx, kp = jax.random.split(key)
    x = jax.random.normal(kx, (B, C, H, W), jnp.float32)

    # Check both the module-default layer scale (1e6) and an O(1) scale so that
    # conv / residual-path errors cannot hide behind the huge gamma.
    for layer_scale, rel_tol, abs_tol in ((1000000.0, 5e-2, 1e-3), (1.0, 0.0, 1e-2)):
        params = init_params(kp, C, layer_scale=layer_scale)
        out = next_block(x, params)
        jax.block_until_ready(out)
        assert out.shape == (B, C, H, W)
        ref = next_block_ref(x, params)
        scale = float(jnp.max(jnp.abs(ref)))
        max_err = float(jnp.max(jnp.abs(out - ref)))
        assert max_err <= rel_tol * scale + abs_tol, (layer_scale, max_err, scale)

    print("KERNEL_OK")
</pallas_src>

<mosaic_0001>
module attributes {stable_mosaic.version = 11 : i64} {
  func.func @next_block_kernel(%arg0: i32, %arg1: memref<1x4x256xf32, #tpu.memory_space<vmem>>, %arg2: memref<4x49xf32, #tpu.memory_space<vmem>>, %arg3: memref<4x1xf32, #tpu.memory_space<vmem>>, %arg4: memref<16x4xbf16, #tpu.memory_space<vmem>>, %arg5: memref<16x1xf32, #tpu.memory_space<vmem>>, %arg6: memref<4x16xbf16, #tpu.memory_space<vmem>>, %arg7: memref<4x1xf32, #tpu.memory_space<vmem>>, %arg8: memref<1x4x256xf32, #tpu.memory_space<vmem>>, %arg9: memref<4x512xf32, #tpu.memory_space<vmem>>) attributes {dimension_semantics = [#tpu.dimension_semantics<parallel>], iteration_bounds = array<i64: 2>, scalar_prefetch = 0 : i64, scratch_operands = 1 : i64, tpu.core_type = #tpu.core_type<tc>, window_params = [{transform_indices = @transform_0, window_bounds = array<i64: 1, 4, 256>}, {pipeline_mode = #tpu.pipeline_mode<synchronous>, transform_indices = @transform_1, window_bounds = array<i64: 4, 49>}, {pipeline_mode = #tpu.pipeline_mode<synchronous>, transform_indices = @transform_2, window_bounds = array<i64: 4, 1>}, {pipeline_mode = #tpu.pipeline_mode<synchronous>, transform_indices = @transform_3, window_bounds = array<i64: 16, 4>}, {pipeline_mode = #tpu.pipeline_mode<synchronous>, transform_indices = @transform_4, window_bounds = array<i64: 16, 1>}, {pipeline_mode = #tpu.pipeline_mode<synchronous>, transform_indices = @transform_5, window_bounds = array<i64: 4, 16>}, {pipeline_mode = #tpu.pipeline_mode<synchronous>, transform_indices = @transform_6, window_bounds = array<i64: 4, 1>}, {transform_indices = @transform_7, window_bounds = array<i64: 1, 4, 256>}]} {
    %c0 = arith.constant 0 : index
    %c0_0 = arith.constant 0 : index
    %c0_1 = arith.constant 0 : index
    %0 = vector.load %arg1[%c0, %c0_0, %c0_1] : memref<1x4x256xf32, #tpu.memory_space<vmem>>, vector<1x4x256xf32>
    %1 = vector.shape_cast %0 : vector<1x4x256xf32> to vector<4x256xf32>
    %cst = arith.constant 0.000000e+00 : f32
    %2 = vector.broadcast %cst : f32 to vector<4x128xf32>
    %c0_2 = arith.constant 0 : index
    %c0_3 = arith.constant 0 : index
    %3 = vector.load %arg9[%c0_2, %c0_3] : memref<4x512xf32, #tpu.memory_space<vmem>>, vector<4x128xf32>
    tpu.vector_store %arg9[%c0_2, %c0_3], %2 {strides = array<i32>} : memref<4x512xf32, #tpu.memory_space<vmem>>, vector<4x128xf32>,
    %cst_4 = arith.constant 0.000000e+00 : f32
    %4 = vector.broadcast %cst_4 : f32 to vector<4x128xf32>
    %c0_5 = arith.constant 0 : index
    %c384 = arith.constant 384 : index
    %5 = vector.load %arg9[%c0_5, %c384] : memref<4x512xf32, #tpu.memory_space<vmem>>, vector<4x128xf32>
    tpu.vector_store %arg9[%c0_5, %c384], %4 {strides = array<i32>} : memref<4x512xf32, #tpu.memory_space<vmem>>, vector<4x128xf32>,
    %c0_6 = arith.constant 0 : index
    %c128 = arith.constant 128 : index
    %6 = vector.load %arg9[%c0_6, %c128] : memref<4x512xf32, #tpu.memory_space<vmem>>, vector<4x256xf32>
    tpu.vector_store %arg9[%c0_6, %c128], %1 {strides = array<i32>} : memref<4x512xf32, #tpu.memory_space<vmem>>, vector<4x256xf32>,
    %c0_7 = arith.constant 0 : index
    %c0_8 = arith.constant 0 : index
    %7 = vector.load %arg9[%c0_7, %c0_8] : memref<4x512xf32, #tpu.memory_space<vmem>>, vector<4x512xf32>
    %8 = tpu.iota {dimensions = array<i32: 1>} : vector<1x256xi32>
    %c16_i32 = arith.constant 16 : i32
    %c0_i32 = arith.constant 0 : i32
    %9 = arith.cmpi eq, %c16_i32, %c0_i32 : i32
    %c1_i32 = arith.constant 1 : i32
    %10 = arith.select %9, %c1_i32, %c16_i32 : i32
    %11 = vector.broadcast %10 : i32 to vector<1x256xi32>
    %12 = arith.remsi %8, %11 : vector<1x256xi32>
    %c0_i32_9 = arith.constant 0 : i32
    %13 = vector.broadcast %c0_i32_9 : i32 to vector<1x256xi32>
    %14 = arith.cmpi ne, %12, %13 : vector<1x256xi32>
    %c0_i32_10 = arith.constant 0 : i32
    %15 = vector.broadcast %c0_i32_10 : i32 to vector<1x256xi32>
    %16 = arith.cmpi slt, %12, %15 : vector<1x256xi32>
    %c0_i32_11 = arith.constant 0 : i32
    %17 = arith.cmpi slt, %10, %c0_i32_11 : i32
    %18 = vector.broadcast %17 : i1 to vector<1x256xi1>
    %19 = vector.broadcast %18 : vector<1x256xi1> to vector<1x256xi1>
    %20 = arith.xori %16, %19 : vector<1x256xi1>
    %21 = arith.andi %20, %14 : vector<1x256xi1>
    %22 = vector.broadcast %10 : i32 to vector<1x256xi32>
    %23 = arith.addi %12, %22 : vector<1x256xi32>
    %24 = arith.select %21, %23, %12 : vector<1x256xi1>, vector<1x256xi32>
    %c0_12 = arith.constant 0 : index
    %c0_13 = arith.constant 0 : index
    %25 = vector.load %arg2[%c0_12, %c0_13] : memref<4x49xf32, #tpu.memory_space<vmem>>, vector<4x49xf32>
    %26 = vector.extract_strided_slice %7 {offsets = [0, 77], sizes = [4, 256], strides = [1, 1]} : vector<4x512xf32> to vector<4x256xf32>
    %27 = vector.extract_strided_slice %25 {offsets = [0, 0], sizes = [4, 1], strides = [1, 1]} : vector<4x49xf32> to vector<4x1xf32>
    %28 = vector.broadcast %27 : vector<4x1xf32> to vector<4x256xf32>
    %29 = arith.mulf %26, %28 : vector<4x256xf32>
    %30 = vector.extract_strided_slice %7 {offsets = [0, 93], sizes = [4, 256], strides = [1, 1]} : vector<4x512xf32> to vector<4x256xf32>
    %31 = vector.extract_strided_slice %25 {offsets = [0, 7], sizes = [4, 1], strides = [1, 1]} : vector<4x49xf32> to vector<4x1xf32>
    %32 = vector.broadcast %31 : vector<4x1xf32> to vector<4x256xf32>
    %33 = arith.mulf %30, %32 : vector<4x256xf32>
    %34 = arith.addf %29, %33 : vector<4x256xf32>
    %35 = vector.extract_strided_slice %7 {offsets = [0, 109], sizes = [4, 256], strides = [1, 1]} : vector<4x512xf32> to vector<4x256xf32>
    %36 = vector.extract_strided_slice %25 {offsets = [0, 14], sizes = [4, 1], strides = [1, 1]} : vector<4x49xf32> to vector<4x1xf32>
    %37 = vector.broadcast %36 : vector<4x1xf32> to vector<4x256xf32>
    %38 = arith.mulf %35, %37 : vector<4x256xf32>
    %39 = arith.addf %34, %38 : vector<4x256xf32>
    %40 = vector.extract_strided_slice %7 {offsets = [0, 125], sizes = [4, 256], strides = [1, 1]} : vector<4x512xf32> to vector<4x256xf32>
    %41 = vector.extract_strided_slice %25 {offsets = [0, 21], sizes = [4, 1], strides = [1, 1]} : vector<4x49xf32> to vector<4x1xf32>
    %42 = vector.broadcast %41 : vector<4x1xf32> to vector<4x256xf32>
    %43 = arith.mulf %40, %42 : vector<4x256xf32>
    %44 = arith.addf %39, %43 : vector<4x256xf32>
    %45 = vector.extract_strided_slice %7 {offsets = [0, 141], sizes = [4, 256], strides = [1, 1]} : vector<4x512xf32> to vector<4x256xf32>
    %46 = vector.extract_strided_slice %25 {offsets = [0, 28], sizes = [4, 1], strides = [1, 1]} : vector<4x49xf32> to vector<4x1xf32>
    %47 = vector.broadcast %46 : vector<4x1xf32> to vector<4x256xf32>
    %48 = arith.mulf %45, %47 : vector<4x256xf32>
    %49 = arith.addf %44, %48 : vector<4x256xf32>
    %50 = vector.extract_strided_slice %7 {offsets = [0, 157], sizes = [4, 256], strides = [1, 1]} : vector<4x512xf32> to vector<4x256xf32>
    %51 = vector.extract_strided_slice %25 {offsets = [0, 35], sizes = [4, 1], strides = [1, 1]} : vector<4x49xf32> to vector<4x1xf32>
    %52 = vector.broadcast %51 : vector<4x1xf32> to vector<4x256xf32>
    %53 = arith.mulf %50, %52 : vector<4x256xf32>
    %54 = arith.addf %49, %53 : vector<4x256xf32>
    %55 = vector.extract_strided_slice %7 {offsets = [0, 173], sizes = [4, 256], strides = [1, 1]} : vector<4x512xf32> to vector<4x256xf32>
    %56 = vector.extract_strided_slice %25 {offsets = [0, 42], sizes = [4, 1], strides = [1, 1]} : vector<4x49xf32> to vector<4x1xf32>
    %57 = vector.broadcast %56 : vector<4x1xf32> to vector<4x256xf32>
    %58 = arith.mulf %55, %57 : vector<4x256xf32>
    %59 = arith.addf %54, %58 : vector<4x256xf32>
    %c-3_i32 = arith.constant -3 : i32
    %60 = vector.broadcast %c-3_i32 : i32 to vector<1x256xi32>
    %61 = arith.addi %24, %60 : vector<1x256xi32>
    %c0_i32_14 = arith.constant 0 : i32
    %62 = vector.broadcast %c0_i32_14 : i32 to vector<1x256xi32>
    %63 = arith.cmpi sge, %61, %62 : vector<1x256xi32>
    %c-3_i32_15 = arith.constant -3 : i32
    %64 = vector.broadcast %c-3_i32_15 : i32 to vector<1x256xi32>
    %65 = arith.addi %24, %64 : vector<1x256xi32>
    %c16_i32_16 = arith.constant 16 : i32
    %66 = vector.broadcast %c16_i32_16 : i32 to vector<1x256xi32>
    %67 = arith.cmpi slt, %65, %66 : vector<1x256xi32>
    %68 = arith.andi %63, %67 : vector<1x256xi1>
    %cst_17 = arith.constant 0.000000e+00 : f32
    %69 = vector.shape_cast %68 : vector<1x256xi1> to vector<1x256xi1>
    %70 = vector.broadcast %69 : vector<1x256xi1> to vector<4x256xi1>
    %71 = vector.broadcast %cst_17 : f32 to vector<4x256xf32>
    %72 = arith.select %70, %59, %71 : vector<4x256xi1>, vector<4x256xf32>
    %73 = vector.extract_strided_slice %7 {offsets = [0, 78], sizes = [4, 256], strides = [1, 1]} : vector<4x512xf32> to vector<4x256xf32>
    %74 = vector.extract_strided_slice %25 {offsets = [0, 1], sizes = [4, 1], strides = [1, 1]} : vector<4x49xf32> to vector<4x1xf32>
    %75 = vector.broadcast %74 : vector<4x1xf32> to vector<4x256xf32>
    %76 = arith.mulf %73, %75 : vector<4x256xf32>
    %77 = vector.extract_strided_slice %7 {offsets = [0, 94], sizes = [4, 256], strides = [1, 1]} : vector<4x512xf32> to vector<4x256xf32>
    %78 = vector.extract_strided_slice %25 {offsets = [0, 8], sizes = [4, 1], strides = [1, 1]} : vector<4x49xf32> to vector<4x1xf32>
    %79 = vector.broadcast %78 : vector<4x1xf32> to vector<4x256xf32>
    %80 = arith.mulf %77, %79 : vector<4x256xf32>
    %81 = arith.addf %76, %80 : vector<4x256xf32>
    %82 = vector.extract_strided_slice %7 {offsets = [0, 110], sizes = [4, 256], strides = [1, 1]} : vector<4x512xf32> to vector<4x256xf32>
    %83 = vector.extract_strided_slice %25 {offsets = [0, 15], sizes = [4, 1], strides = [1, 1]} : vector<4x49xf32> to vector<4x1xf32>
    %84 = vector.broadcast %83 : vector<4x1xf32> to vector<4x256xf32>
    %85 = arith.mulf %82, %84 : vector<4x256xf32>
    %86 = arith.addf %81, %85 : vector<4x256xf32>
    %87 = vector.extract_strided_slice %7 {offsets = [0, 126], sizes = [4, 256], strides = [1, 1]} : vector<4x512xf32> to vector<4x256xf32>
    %88 = vector.extract_strided_slice %25 {offsets = [0, 22], sizes = [4, 1], strides = [1, 1]} : vector<4x49xf32> to vector<4x1xf32>
    %89 = vector.broadcast %88 : vector<4x1xf32> to vector<4x256xf32>
    %90 = arith.mulf %87, %89 : vector<4x256xf32>
    %91 = arith.addf %86, %90 : vector<4x256xf32>
    %92 = vector.extract_strided_slice %7 {offsets = [0, 142], sizes = [4, 256], strides = [1, 1]} : vector<4x512xf32> to vector<4x256xf32>
    %93 = vector.extract_strided_slice %25 {offsets = [0, 29], sizes = [4, 1], strides = [1, 1]} : vector<4x49xf32> to vector<4x1xf32>
    %94 = vector.broadcast %93 : vector<4x1xf32> to vector<4x256xf32>
    %95 = arith.mulf %92, %94 : vector<4x256xf32>
    %96 = arith.addf %91, %95 : vector<4x256xf32>
    %97 = vector.extract_strided_slice %7 {offsets = [0, 158], sizes = [4, 256], strides = [1, 1]} : vector<4x512xf32> to vector<4x256xf32>
    %98 = vector.extract_strided_slice %25 {offsets = [0, 36], sizes = [4, 1], strides = [1, 1]} : vector<4x49xf32> to vector<4x1xf32>
    %99 = vector.broadcast %98 : vector<4x1xf32> to vector<4x256xf32>
    %100 = arith.mulf %97, %99 : vector<4x256xf32>
    %101 = arith.addf %96, %100 : vector<4x256xf32>
    %102 = vector.extract_strided_slice %7 {offsets = [0, 174], sizes = [4, 256], strides = [1, 1]} : vector<4x512xf32> to vector<4x256xf32>
    %103 = vector.extract_strided_slice %25 {offsets = [0, 43], sizes = [4, 1], strides = [1, 1]} : vector<4x49xf32> to vector<4x1xf32>
    %104 = vector.broadcast %103 : vector<4x1xf32> to vector<4x256xf32>
    %105 = arith.mulf %102, %104 : vector<4x256xf32>
    %106 = arith.addf %101, %105 : vector<4x256xf32>
    %c-2_i32 = arith.constant -2 : i32
    %107 = vector.broadcast %c-2_i32 : i32 to vector<1x256xi32>
    %108 = arith.addi %24, %107 : vector<1x256xi32>
    %c0_i32_18 = arith.constant 0 : i32
    %109 = vector.broadcast %c0_i32_18 : i32 to vector<1x256xi32>
    %110 = arith.cmpi sge, %108, %109 : vector<1x256xi32>
    %c-2_i32_19 = arith.constant -2 : i32
    %111 = vector.broadcast %c-2_i32_19 : i32 to vector<1x256xi32>
    %112 = arith.addi %24, %111 : vector<1x256xi32>
    %c16_i32_20 = arith.constant 16 : i32
    %113 = vector.broadcast %c16_i32_20 : i32 to vector<1x256xi32>
    %114 = arith.cmpi slt, %112, %113 : vector<1x256xi32>
    %115 = arith.andi %110, %114 : vector<1x256xi1>
    %cst_21 = arith.constant 0.000000e+00 : f32
    %116 = vector.shape_cast %115 : vector<1x256xi1> to vector<1x256xi1>
    %117 = vector.broadcast %116 : vector<1x256xi1> to vector<4x256xi1>
    %118 = vector.broadcast %cst_21 : f32 to vector<4x256xf32>
    %119 = arith.select %117, %106, %118 : vector<4x256xi1>, vector<4x256xf32>
    %120 = vector.extract_strided_slice %7 {offsets = [0, 79], sizes = [4, 256], strides = [1, 1]} : vector<4x512xf32> to vector<4x256xf32>
    %121 = vector.extract_strided_slice %25 {offsets = [0, 2], sizes = [4, 1], strides = [1, 1]} : vector<4x49xf32> to vector<4x1xf32>
    %122 = vector.broadcast %121 : vector<4x1xf32> to vector<4x256xf32>
    %123 = arith.mulf %120, %122 : vector<4x256xf32>
    %124 = vector.extract_strided_slice %7 {offsets = [0, 95], sizes = [4, 256], strides = [1, 1]} : vector<4x512xf32> to vector<4x256xf32>
    %125 = vector.extract_strided_slice %25 {offsets = [0, 9], sizes = [4, 1], strides = [1, 1]} : vector<4x49xf32> to vector<4x1xf32>
    %126 = vector.broadcast %125 : vector<4x1xf32> to vector<4x256xf32>
    %127 = arith.mulf %124, %126 : vector<4x256xf32>
    %128 = arith.addf %123, %127 : vector<4x256xf32>
    %129 = vector.extract_strided_slice %7 {offsets = [0, 111], sizes = [4, 256], strides = [1, 1]} : vector<4x512xf32> to vector<4x256xf32>
    %130 = vector.extract_strided_slice %25 {offsets = [0, 16], sizes = [4, 1], strides = [1, 1]} : vector<4x49xf32> to vector<4x1xf32>
    %131 = vector.broadcast %130 : vector<4x1xf32> to vector<4x256xf32>
    %132 = arith.mulf %129, %131 : vector<4x256xf32>
    %133 = arith.addf %128, %132 : vector<4x256xf32>
    %134 = vector.extract_strided_slice %7 {offsets = [0, 127], sizes = [4, 256], strides = [1, 1]} : vector<4x512xf32> to vector<4x256xf32>
    %135 = vector.extract_strided_slice %25 {offsets = [0, 23], sizes = [4, 1], strides = [1, 1]} : vector<4x49xf32> to vector<4x1xf32>
    %136 = vector.broadcast %135 : vector<4x1xf32> to vector<4x256xf32>
    %137 = arith.mulf %134, %136 : vector<4x256xf32>
    %138 = arith.addf %133, %137 : vector<4x256xf32>
    %139 = vector.extract_strided_slice %7 {offsets = [0, 143], sizes = [4, 256], strides = [1, 1]} : vector<4x512xf32> to vector<4x256xf32>
    %140 = vector.extract_strided_slice %25 {offsets = [0, 30], sizes = [4, 1], strides = [1, 1]} : vector<4x49xf32> to vector<4x1xf32>
    %141 = vector.broadcast %140 : vector<4x1xf32> to vector<4x256xf32>
    %142 = arith.mulf %139, %141 : vector<4x256xf32>
    %143 = arith.addf %138, %142 : vector<4x256xf32>
    %144 = vector.extract_strided_slice %7 {offsets = [0, 159], sizes = [4, 256], strides = [1, 1]} : vector<4x512xf32> to vector<4x256xf32>
    %145 = vector.extract_strided_slice %25 {offsets = [0, 37], sizes = [4, 1], strides = [1, 1]} : vector<4x49xf32> to vector<4x1xf32>
    %146 = vector.broadcast %145 : vector<4x1xf32> to vector<4x256xf32>
    %147 = arith.mulf %144, %146 : vector<4x256xf32>
    %148 = arith.addf %143, %147 : vector<4x256xf32>
    %149 = vector.extract_strided_slice %7 {offsets = [0, 175], sizes = [4, 256], strides = [1, 1]} : vector<4x512xf32> to vector<4x256xf32>
    %150 = vector.extract_strided_slice %25 {offsets = [0, 44], sizes = [4, 1], strides = [1, 1]} : vector<4x49xf32> to vector<4x1xf32>
    %151 = vector.broadcast %150 : vector<4x1xf32> to vector<4x256xf32>
    %152 = arith.mulf %149, %151 : vector<4x256xf32>
    %153 = arith.addf %148, %152 : vector<4x256xf32>
    %c-1_i32 = arith.constant -1 : i32
    %154 = vector.broadcast %c-1_i32 : i32 to vector<1x256xi32>
    %155 = arith.addi %24, %154 : vector<1x256xi32>
    %c0_i32_22 = arith.constant 0 : i32
    %156 = vector.broadcast %c0_i32_22 : i32 to vector<1x256xi32>
    %157 = arith.cmpi sge, %155, %156 : vector<1x256xi32>
    %c-1_i32_23 = arith.constant -1 : i32
    %158 = vector.broadcast %c-1_i32_23 : i32 to vector<1x256xi32>
    %159 = arith.addi %24, %158 : vector<1x256xi32>
    %c16_i32_24 = arith.constant 16 : i32
    %160 = vector.broadcast %c16_i32_24 : i32 to vector<1x256xi32>
    %161 = arith.cmpi slt, %159, %160 : vector<1x256xi32>
    %162 = arith.andi %157, %161 : vector<1x256xi1>
    %cst_25 = arith.constant 0.000000e+00 : f32
    %163 = vector.shape_cast %162 : vector<1x256xi1> to vector<1x256xi1>
    %164 = vector.broadcast %163 : vector<1x256xi1> to vector<4x256xi1>
    %165 = vector.broadcast %cst_25 : f32 to vector<4x256xf32>
    %166 = arith.select %164, %153, %165 : vector<4x256xi1>, vector<4x256xf32>
    %167 = vector.extract_strided_slice %7 {offsets = [0, 80], sizes = [4, 256], strides = [1, 1]} : vector<4x512xf32> to vector<4x256xf32>
    %168 = vector.extract_strided_slice %25 {offsets = [0, 3], sizes = [4, 1], strides = [1, 1]} : vector<4x49xf32> to vector<4x1xf32>
    %169 = vector.broadcast %168 : vector<4x1xf32> to vector<4x256xf32>
    %170 = arith.mulf %167, %169 : vector<4x256xf32>
    %171 = vector.extract_strided_slice %7 {offsets = [0, 96], sizes = [4, 256], strides = [1, 1]} : vector<4x512xf32> to vector<4x256xf32>
    %172 = vector.extract_strided_slice %25 {offsets = [0, 10], sizes = [4, 1], strides = [1, 1]} : vector<4x49xf32> to vector<4x1xf32>
    %173 = vector.broadcast %172 : vector<4x1xf32> to vector<4x256xf32>
    %174 = arith.mulf %171, %173 : vector<4x256xf32>
    %175 = arith.addf %170, %174 : vector<4x256xf32>
    %176 = vector.extract_strided_slice %7 {offsets = [0, 112], sizes = [4, 256], strides = [1, 1]} : vector<4x512xf32> to vector<4x256xf32>
    %177 = vector.extract_strided_slice %25 {offsets = [0, 17], sizes = [4, 1], strides = [1, 1]} : vector<4x49xf32> to vector<4x1xf32>
    %178 = vector.broadcast %177 : vector<4x1xf32> to vector<4x256xf32>
    %179 = arith.mulf %176, %178 : vector<4x256xf32>
    %180 = arith.addf %175, %179 : vector<4x256xf32>
    %181 = vector.extract_strided_slice %7 {offsets = [0, 128], sizes = [4, 256], strides = [1, 1]} : vector<4x512xf32> to vector<4x256xf32>
    %182 = vector.extract_strided_slice %25 {offsets = [0, 24], sizes = [4, 1], strides = [1, 1]} : vector<4x49xf32> to vector<4x1xf32>
    %183 = vector.broadcast %182 : vector<4x1xf32> to vector<4x256xf32>
    %184 = arith.mulf %181, %183 : vector<4x256xf32>
    %185 = arith.addf %180, %184 : vector<4x256xf32>
    %186 = vector.extract_strided_slice %7 {offsets = [0, 144], sizes = [4, 256], strides = [1, 1]} : vector<4x512xf32> to vector<4x256xf32>
    %187 = vector.extract_strided_slice %25 {offsets = [0, 31], sizes = [4, 1], strides = [1, 1]} : vector<4x49xf32> to vector<4x1xf32>
    %188 = vector.broadcast %187 : vector<4x1xf32> to vector<4x256xf32>
    %189 = arith.mulf %186, %188 : vector<4x256xf32>
    %190 = arith.addf %185, %189 : vector<4x256xf32>
    %191 = vector.extract_strided_slice %7 {offsets = [0, 160], sizes = [4, 256], strides = [1, 1]} : vector<4x512xf32> to vector<4x256xf32>
    %192 = vector.extract_strided_slice %25 {offsets = [0, 38], sizes = [4, 1], strides = [1, 1]} : vector<4x49xf32> to vector<4x1xf32>
    %193 = vector.broadcast %192 : vector<4x1xf32> to vector<4x256xf32>
    %194 = arith.mulf %191, %193 : vector<4x256xf32>
    %195 = arith.addf %190, %194 : vector<4x256xf32>
    %196 = vector.extract_strided_slice %7 {offsets = [0, 176], sizes = [4, 256], strides = [1, 1]} : vector<4x512xf32> to vector<4x256xf32>
    %197 = vector.extract_strided_slice %25 {offsets = [0, 45], sizes = [4, 1], strides = [1, 1]} : vector<4x49xf32> to vector<4x1xf32>
    %198 = vector.broadcast %197 : vector<4x1xf32> to vector<4x256xf32>
    %199 = arith.mulf %196, %198 : vector<4x256xf32>
    %200 = arith.addf %195, %199 : vector<4x256xf32>
    %c0_i32_26 = arith.constant 0 : i32
    %201 = vector.broadcast %c0_i32_26 : i32 to vector<1x256xi32>
    %202 = arith.addi %24, %201 : vector<1x256xi32>
    %c0_i32_27 = arith.constant 0 : i32
    %203 = vector.broadcast %c0_i32_27 : i32 to vector<1x256xi32>
    %204 = arith.cmpi sge, %202, %203 : vector<1x256xi32>
    %c0_i32_28 = arith.constant 0 : i32
    %205 = vector.broadcast %c0_i32_28 : i32 to vector<1x256xi32>
    %206 = arith.addi %24, %205 : vector<1x256xi32>
    %c16_i32_29 = arith.constant 16 : i32
    %207 = vector.broadcast %c16_i32_29 : i32 to vector<1x256xi32>
    %208 = arith.cmpi slt, %206, %207 : vector<1x256xi32>
    %209 = arith.andi %204, %208 : vector<1x256xi1>
    %cst_30 = arith.constant 0.000000e+00 : f32
    %210 = vector.shape_cast %209 : vector<1x256xi1> to vector<1x256xi1>
    %211 = vector.broadcast %210 : vector<1x256xi1> to vector<4x256xi1>
    %212 = vector.broadcast %cst_30 : f32 to vector<4x256xf32>
    %213 = arith.select %211, %200, %212 : vector<4x256xi1>, vector<4x256xf32>
    %214 = vector.extract_strided_slice %7 {offsets = [0, 81], sizes = [4, 256], strides = [1, 1]} : vector<4x512xf32> to vector<4x256xf32>
    %215 = vector.extract_strided_slice %25 {offsets = [0, 4], sizes = [4, 1], strides = [1, 1]} : vector<4x49xf32> to vector<4x1xf32>
    %216 = vector.broadcast %215 : vector<4x1xf32> to vector<4x256xf32>
    %217 = arith.mulf %214, %216 : vector<4x256xf32>
    %218 = vector.extract_strided_slice %7 {offsets = [0, 97], sizes = [4, 256], strides = [1, 1]} : vector<4x512xf32> to vector<4x256xf32>
    %219 = vector.extract_strided_slice %25 {offsets = [0, 11], sizes = [4, 1], strides = [1, 1]} : vector<4x49xf32> to vector<4x1xf32>
    %220 = vector.broadcast %219 : vector<4x1xf32> to vector<4x256xf32>
    %221 = arith.mulf %218, %220 : vector<4x256xf32>
    %222 = arith.addf %217, %221 : vector<4x256xf32>
    %223 = vector.extract_strided_slice %7 {offsets = [0, 113], sizes = [4, 256], strides = [1, 1]} : vector<4x512xf32> to vector<4x256xf32>
    %224 = vector.extract_strided_slice %25 {offsets = [0, 18], sizes = [4, 1], strides = [1, 1]} : vector<4x49xf32> to vector<4x1xf32>
    %225 = vector.broadcast %224 : vector<4x1xf32> to vector<4x256xf32>
    %226 = arith.mulf %223, %225 : vector<4x256xf32>
    %227 = arith.addf %222, %226 : vector<4x256xf32>
    %228 = vector.extract_strided_slice %7 {offsets = [0, 129], sizes = [4, 256], strides = [1, 1]} : vector<4x512xf32> to vector<4x256xf32>
    %229 = vector.extract_strided_slice %25 {offsets = [0, 25], sizes = [4, 1], strides = [1, 1]} : vector<4x49xf32> to vector<4x1xf32>
    %230 = vector.broadcast %229 : vector<4x1xf32> to vector<4x256xf32>
    %231 = arith.mulf %228, %230 : vector<4x256xf32>
    %232 = arith.addf %227, %231 : vector<4x256xf32>
    %233 = vector.extract_strided_slice %7 {offsets = [0, 145], sizes = [4, 256], strides = [1, 1]} : vector<4x512xf32> to vector<4x256xf32>
    %234 = vector.extract_strided_slice %25 {offsets = [0, 32], sizes = [4, 1], strides = [1, 1]} : vector<4x49xf32> to vector<4x1xf32>
    %235 = vector.broadcast %234 : vector<4x1xf32> to vector<4x256xf32>
    %236 = arith.mulf %233, %235 : vector<4x256xf32>
    %237 = arith.addf %232, %236 : vector<4x256xf32>
    %238 = vector.extract_strided_slice %7 {offsets = [0, 161], sizes = [4, 256], strides = [1, 1]} : vector<4x512xf32> to vector<4x256xf32>
    %239 = vector.extract_strided_slice %25 {offsets = [0, 39], sizes = [4, 1], strides = [1, 1]} : vector<4x49xf32> to vector<4x1xf32>
    %240 = vector.broadcast %239 : vector<4x1xf32> to vector<4x256xf32>
    %241 = arith.mulf %238, %240 : vector<4x256xf32>
    %242 = arith.addf %237, %241 : vector<4x256xf32>
    %243 = vector.extract_strided_slice %7 {offsets = [0, 177], sizes = [4, 256], strides = [1, 1]} : vector<4x512xf32> to vector<4x256xf32>
    %244 = vector.extract_strided_slice %25 {offsets = [0, 46], sizes = [4, 1], strides = [1, 1]} : vector<4x49xf32> to vector<4x1xf32>
    %245 = vector.broadcast %244 : vector<4x1xf32> to vector<4x256xf32>
    %246 = arith.mulf %243, %245 : vector<4x256xf32>
    %247 = arith.addf %242, %246 : vector<4x256xf32>
    %c1_i32_31 = arith.constant 1 : i32
    %248 = vector.broadcast %c1_i32_31 : i32 to vector<1x256xi32>
    %249 = arith.addi %24, %248 : vector<1x256xi32>
    %c0_i32_32 = arith.constant 0 : i32
    %250 = vector.broadcast %c0_i32_32 : i32 to vector<1x256xi32>
    %251 = arith.cmpi sge, %249, %250 : vector<1x256xi32>
    %c1_i32_33 = arith.constant 1 : i32
    %252 = vector.broadcast %c1_i32_33 : i32 to vector<1x256xi32>
    %253 = arith.addi %24, %252 : vector<1x256xi32>
    %c16_i32_34 = arith.constant 16 : i32
    %254 = vector.broadcast %c16_i32_34 : i32 to vector<1x256xi32>
    %255 = arith.cmpi slt, %253, %254 : vector<1x256xi32>
    %256 = arith.andi %251, %255 : vector<1x256xi1>
    %cst_35 = arith.constant 0.000000e+00 : f32
    %257 = vector.shape_cast %256 : vector<1x256xi1> to vector<1x256xi1>
    %258 = vector.broadcast %257 : vector<1x256xi1> to vector<4x256xi1>
    %259 = vector.broadcast %cst_35 : f32 to vector<4x256xf32>
    %260 = arith.select %258, %247, %259 : vector<4x256xi1>, vector<4x256xf32>
    %261 = vector.extract_strided_slice %7 {offsets = [0, 82], sizes = [4, 256], strides = [1, 1]} : vector<4x512xf32> to vector<4x256xf32>
    %262 = vector.extract_strided_slice %25 {offsets = [0, 5], sizes = [4, 1], strides = [1, 1]} : vector<4x49xf32> to vector<4x1xf32>
    %263 = vector.broadcast %262 : vector<4x1xf32> to vector<4x256xf32>
    %264 = arith.mulf %261, %263 : vector<4x256xf32>
    %265 = vector.extract_strided_slice %7 {offsets = [0, 98], sizes = [4, 256], strides = [1, 1]} : vector<4x512xf32> to vector<4x256xf32>
    %266 = vector.extract_strided_slice %25 {offsets = [0, 12], sizes = [4, 1], strides = [1, 1]} : vector<4x49xf32> to vector<4x1xf32>
    %267 = vector.broadcast %266 : vector<4x1xf32> to vector<4x256xf32>
    %268 = arith.mulf %265, %267 : vector<4x256xf32>
    %269 = arith.addf %264, %268 : vector<4x256xf32>
    %270 = vector.extract_strided_slice %7 {offsets = [0, 114], sizes = [4, 256], strides = [1, 1]} : vector<4x512xf32> to vector<4x256xf32>
    %271 = vector.extract_strided_slice %25 {offsets = [0, 19], sizes = [4, 1], strides = [1, 1]} : vector<4x49xf32> to vector<4x1xf32>
    %272 = vector.broadcast %271 : vector<4x1xf32> to vector<4x256xf32>
    %273 = arith.mulf %270, %272 : vector<4x256xf32>
    %274 = arith.addf %269, %273 : vector<4x256xf32>
    %275 = vector.extract_strided_slice %7 {offsets = [0, 130], sizes = [4, 256], strides = [1, 1]} : vector<4x512xf32> to vector<4x256xf32>
    %276 = vector.extract_strided_slice %25 {offsets = [0, 26], sizes = [4, 1], strides = [1, 1]} : vector<4x49xf32> to vector<4x1xf32>
    %277 = vector.broadcast %276 : vector<4x1xf32> to vector<4x256xf32>
    %278 = arith.mulf %275, %277 : vector<4x256xf32>
    %279 = arith.addf %274, %278 : vector<4x256xf32>
    %280 = vector.extract_strided_slice %7 {offsets = [0, 146], sizes = [4, 256], strides = [1, 1]} : vector<4x512xf32> to vector<4x256xf32>
    %281 = vector.extract_strided_slice %25 {offsets = [0, 33], sizes = [4, 1], strides = [1, 1]} : vector<4x49xf32> to vector<4x1xf32>
    %282 = vector.broadcast %281 : vector<4x1xf32> to vector<4x256xf32>
    %283 = arith.mulf %280, %282 : vector<4x256xf32>
    %284 = arith.addf %279, %283 : vector<4x256xf32>
    %285 = vector.extract_strided_slice %7 {offsets = [0, 162], sizes = [4, 256], strides = [1, 1]} : vector<4x512xf32> to vector<4x256xf32>
    %286 = vector.extract_strided_slice %25 {offsets = [0, 40], sizes = [4, 1], strides = [1, 1]} : vector<4x49xf32> to vector<4x1xf32>
    %287 = vector.broadcast %286 : vector<4x1xf32> to vector<4x256xf32>
    %288 = arith.mulf %285, %287 : vector<4x256xf32>
    %289 = arith.addf %284, %288 : vector<4x256xf32>
    %290 = vector.extract_strided_slice %7 {offsets = [0, 178], sizes = [4, 256], strides = [1, 1]} : vector<4x512xf32> to vector<4x256xf32>
    %291 = vector.extract_strided_slice %25 {offsets = [0, 47], sizes = [4, 1], strides = [1, 1]} : vector<4x49xf32> to vector<4x1xf32>
    %292 = vector.broadcast %291 : vector<4x1xf32> to vector<4x256xf32>
    %293 = arith.mulf %290, %292 : vector<4x256xf32>
    %294 = arith.addf %289, %293 : vector<4x256xf32>
    %c2_i32 = arith.constant 2 : i32
    %295 = vector.broadcast %c2_i32 : i32 to vector<1x256xi32>
    %296 = arith.addi %24, %295 : vector<1x256xi32>
    %c0_i32_36 = arith.constant 0 : i32
    %297 = vector.broadcast %c0_i32_36 : i32 to vector<1x256xi32>
    %298 = arith.cmpi sge, %296, %297 : vector<1x256xi32>
    %c2_i32_37 = arith.constant 2 : i32
    %299 = vector.broadcast %c2_i32_37 : i32 to vector<1x256xi32>
    %300 = arith.addi %24, %299 : vector<1x256xi32>
    %c16_i32_38 = arith.constant 16 : i32
    %301 = vector.broadcast %c16_i32_38 : i32 to vector<1x256xi32>
    %302 = arith.cmpi slt, %300, %301 : vector<1x256xi32>
    %303 = arith.andi %298, %302 : vector<1x256xi1>
    %cst_39 = arith.constant 0.000000e+00 : f32
    %304 = vector.shape_cast %303 : vector<1x256xi1> to vector<1x256xi1>
    %305 = vector.broadcast %304 : vector<1x256xi1> to vector<4x256xi1>
    %306 = vector.broadcast %cst_39 : f32 to vector<4x256xf32>
    %307 = arith.select %305, %294, %306 : vector<4x256xi1>, vector<4x256xf32>
    %308 = vector.extract_strided_slice %7 {offsets = [0, 83], sizes = [4, 256], strides = [1, 1]} : vector<4x512xf32> to vector<4x256xf32>
    %309 = vector.extract_strided_slice %25 {offsets = [0, 6], sizes = [4, 1], strides = [1, 1]} : vector<4x49xf32> to vector<4x1xf32>
    %310 = vector.broadcast %309 : vector<4x1xf32> to vector<4x256xf32>
    %311 = arith.mulf %308, %310 : vector<4x256xf32>
    %312 = vector.extract_strided_slice %7 {offsets = [0, 99], sizes = [4, 256], strides = [1, 1]} : vector<4x512xf32> to vector<4x256xf32>
    %313 = vector.extract_strided_slice %25 {offsets = [0, 13], sizes = [4, 1], strides = [1, 1]} : vector<4x49xf32> to vector<4x1xf32>
    %314 = vector.broadcast %313 : vector<4x1xf32> to vector<4x256xf32>
    %315 = arith.mulf %312, %314 : vector<4x256xf32>
    %316 = arith.addf %311, %315 : vector<4x256xf32>
    %317 = vector.extract_strided_slice %7 {offsets = [0, 115], sizes = [4, 256], strides = [1, 1]} : vector<4x512xf32> to vector<4x256xf32>
    %318 = vector.extract_strided_slice %25 {offsets = [0, 20], sizes = [4, 1], strides = [1, 1]} : vector<4x49xf32> to vector<4x1xf32>
    %319 = vector.broadcast %318 : vector<4x1xf32> to vector<4x256xf32>
    %320 = arith.mulf %317, %319 : vector<4x256xf32>
    %321 = arith.addf %316, %320 : vector<4x256xf32>
    %322 = vector.extract_strided_slice %7 {offsets = [0, 131], sizes = [4, 256], strides = [1, 1]} : vector<4x512xf32> to vector<4x256xf32>
    %323 = vector.extract_strided_slice %25 {offsets = [0, 27], sizes = [4, 1], strides = [1, 1]} : vector<4x49xf32> to vector<4x1xf32>
    %324 = vector.broadcast %323 : vector<4x1xf32> to vector<4x256xf32>
    %325 = arith.mulf %322, %324 : vector<4x256xf32>
    %326 = arith.addf %321, %325 : vector<4x256xf32>
    %327 = vector.extract_strided_slice %7 {offsets = [0, 147], sizes = [4, 256], strides = [1, 1]} : vector<4x512xf32> to vector<4x256xf32>
    %328 = vector.extract_strided_slice %25 {offsets = [0, 34], sizes = [4, 1], strides = [1, 1]} : vector<4x49xf32> to vector<4x1xf32>
    %329 = vector.broadcast %328 : vector<4x1xf32> to vector<4x256xf32>
    %330 = arith.mulf %327, %329 : vector<4x256xf32>
    %331 = arith.addf %326, %330 : vector<4x256xf32>
    %332 = vector.extract_strided_slice %7 {offsets = [0, 163], sizes = [4, 256], strides = [1, 1]} : vector<4x512xf32> to vector<4x256xf32>
    %333 = vector.extract_strided_slice %25 {offsets = [0, 41], sizes = [4, 1], strides = [1, 1]} : vector<4x49xf32> to vector<4x1xf32>
    %334 = vector.broadcast %333 : vector<4x1xf32> to vector<4x256xf32>
    %335 = arith.mulf %332, %334 : vector<4x256xf32>
    %336 = arith.addf %331, %335 : vector<4x256xf32>
    %337 = vector.extract_strided_slice %7 {offsets = [0, 179], sizes = [4, 256], strides = [1, 1]} : vector<4x512xf32> to vector<4x256xf32>
    %338 = vector.extract_strided_slice %25 {offsets = [0, 48], sizes = [4, 1], strides = [1, 1]} : vector<4x49xf32> to vector<4x1xf32>
    %339 = vector.broadcast %338 : vector<4x1xf32> to vector<4x256xf32>
    %340 = arith.mulf %337, %339 : vector<4x256xf32>
    %341 = arith.addf %336, %340 : vector<4x256xf32>
    %c3_i32 = arith.constant 3 : i32
    %342 = vector.broadcast %c3_i32 : i32 to vector<1x256xi32>
    %343 = arith.addi %24, %342 : vector<1x256xi32>
    %c0_i32_40 = arith.constant 0 : i32
    %344 = vector.broadcast %c0_i32_40 : i32 to vector<1x256xi32>
    %345 = arith.cmpi sge, %343, %344 : vector<1x256xi32>
    %c3_i32_41 = arith.constant 3 : i32
    %346 = vector.broadcast %c3_i32_41 : i32 to vector<1x256xi32>
    %347 = arith.addi %24, %346 : vector<1x256xi32>
    %c16_i32_42 = arith.constant 16 : i32
    %348 = vector.broadcast %c16_i32_42 : i32 to vector<1x256xi32>
    %349 = arith.cmpi slt, %347, %348 : vector<1x256xi32>
    %350 = arith.andi %345, %349 : vector<1x256xi1>
    %cst_43 = arith.constant 0.000000e+00 : f32
    %351 = vector.shape_cast %350 : vector<1x256xi1> to vector<1x256xi1>
    %352 = vector.broadcast %351 : vector<1x256xi1> to vector<4x256xi1>
    %353 = vector.broadcast %cst_43 : f32 to vector<4x256xf32>
    %354 = arith.select %352, %341, %353 : vector<4x256xi1>, vector<4x256xf32>
    %355 = arith.addf %72, %119 : vector<4x256xf32>
    %356 = arith.addf %166, %213 : vector<4x256xf32>
    %357 = arith.addf %260, %307 : vector<4x256xf32>
    %358 = arith.addf %355, %356 : vector<4x256xf32>
    %359 = arith.addf %357, %354 : vector<4x256xf32>
    %360 = arith.addf %358, %359 : vector<4x256xf32>
    %c0_44 = arith.constant 0 : index
    %c0_45 = arith.constant 0 : index
    %361 = vector.load %arg3[%c0_44, %c0_45] : memref<4x1xf32, #tpu.memory_space<vmem>>, vector<4x1xf32>
    %362 = vector.broadcast %361 : vector<4x1xf32> to vector<4x256xf32>
    %363 = arith.addf %360, %362 : vector<4x256xf32>
    %cst_46 = arith.constant dense<0.000000e+00> : vector<256xf32>
    %364 = vector.multi_reduction <add>, %363, %cst_46 [0] : vector<4x256xf32> to vector<256xf32>
    %365 = vector.shape_cast %364 : vector<256xf32> to vector<1x256xf32>
    %cst_47 = arith.constant 4.000000e+00 : f32
    %366 = vector.broadcast %cst_47 : f32 to vector<1x256xf32>
    %367 = arith.divf %365, %366 : vector<1x256xf32>
    %368 = vector.broadcast %367 : vector<1x256xf32> to vector<4x256xf32>
    %369 = arith.subf %363, %368 : vector<4x256xf32>
    %370 = arith.mulf %369, %369 : vector<4x256xf32>
    %cst_48 = arith.constant dense<0.000000e+00> : vector<256xf32>
    %371 = vector.multi_reduction <add>, %370, %cst_48 [0] : vector<4x256xf32> to vector<256xf32>
    %372 = vector.shape_cast %371 : vector<256xf32> to vector<1x256xf32>
    %cst_49 = arith.constant 4.000000e+00 : f32
    %373 = vector.broadcast %cst_49 : f32 to vector<1x256xf32>
    %374 = arith.divf %372, %373 : vector<1x256xf32>
    %375 = vector.broadcast %367 : vector<1x256xf32> to vector<4x256xf32>
    %376 = arith.subf %363, %375 : vector<4x256xf32>
    %cst_50 = arith.constant 9.99999997E-7 : f32
    %377 = vector.broadcast %cst_50 : f32 to vector<1x256xf32>
    %378 = arith.addf %374, %377 : vector<1x256xf32>
    %379 = math.rsqrt %378 : vector<1x256xf32>
    %380 = vector.broadcast %379 : vector<1x256xf32> to vector<4x256xf32>
    %381 = arith.mulf %376, %380 : vector<4x256xf32>
    %c0_51 = arith.constant 0 : index
    %c0_52 = arith.constant 0 : index
    %382 = vector.load %arg4[%c0_51, %c0_52] : memref<16x4xbf16, #tpu.memory_space<vmem>>, vector<16x4xbf16>
    %383 = arith.truncf %381 : vector<4x256xf32> to vector<4x256xbf16>
    %cst_53 = arith.constant dense<0.000000e+00> : vector<16x256xf32>
    %384 = tpu.matmul %382, %383, %cst_53 {dimension_numbers = #tpu.dot_dimension_numbers<[1], [0], [0], [1], [0, 0, 1, 1], [], []>} : vector<16x4xbf16>, vector<4x256xbf16>, vector<16x256xf32> -> vector<16x256xf32>
    %c0_54 = arith.constant 0 : index
    %c0_55 = arith.constant 0 : index
    %385 = vector.load %arg5[%c0_54, %c0_55] : memref<16x1xf32, #tpu.memory_space<vmem>>, vector<16x1xf32>
    %386 = vector.broadcast %385 : vector<16x1xf32> to vector<16x256xf32>
    %387 = arith.addf %384, %386 : vector<16x256xf32>
    %cst_56 = arith.constant 5.000000e-01 : f32
    %388 = vector.broadcast %cst_56 : f32 to vector<16x256xf32>
    %389 = arith.mulf %388, %387 : vector<16x256xf32>
    %cst_57 = arith.constant 2.000000e+00 : f32
    %390 = math.sqrt %cst_57 : f32
    %cst_58 = arith.constant 1.000000e+00 : f32
    %391 = arith.divf %cst_58, %390 : f32
    %392 = vector.broadcast %391 : f32 to vector<16x256xf32>
    %393 = arith.mulf %387, %392 : vector<16x256xf32>
    %394 = math.erf %393 : vector<16x256xf32>
    %cst_59 = arith.constant 1.000000e+00 : f32
    %395 = vector.broadcast %cst_59 : f32 to vector<16x256xf32>
    %396 = arith.addf %395, %394 : vector<16x256xf32>
    %397 = arith.mulf %389, %396 : vector<16x256xf32>
    %c0_60 = arith.constant 0 : index
    %c0_61 = arith.constant 0 : index
    %398 = vector.load %arg6[%c0_60, %c0_61] : memref<4x16xbf16, #tpu.memory_space<vmem>>, vector<4x16xbf16>
    %399 = arith.truncf %397 : vector<16x256xf32> to vector<16x256xbf16>
    %cst_62 = arith.constant dense<0.000000e+00> : vector<4x256xf32>
    %400 = tpu.matmul %398, %399, %cst_62 {dimension_numbers = #tpu.dot_dimension_numbers<[1], [0], [0], [1], [0, 0, 1, 1], [], []>} : vector<4x16xbf16>, vector<16x256xbf16>, vector<4x256xf32> -> vector<4x256xf32>
    %c0_63 = arith.constant 0 : index
    %c0_64 = arith.constant 0 : index
    %401 = vector.load %arg7[%c0_63, %c0_64] : memref<4x1xf32, #tpu.memory_space<vmem>>, vector<4x1xf32>
    %402 = vector.broadcast %401 : vector<4x1xf32> to vector<4x256xf32>
    %403 = arith.addf %400, %402 : vector<4x256xf32>
    %404 = arith.addf %1, %403 : vector<4x256xf32>
    %c0_65 = arith.constant 0 : index
    %c0_66 = arith.constant 0 : index
    %c0_67 = arith.constant 0 : index
    %405 = vector.load %arg8[%c0_65, %c0_66, %c0_67] : memref<1x4x256xf32, #tpu.memory_space<vmem>>, vector<1x4x256xf32>
    %406 = vector.shape_cast %405 : vector<1x4x256xf32> to vector<4x256xf32>
    %407 = vector.shape_cast %404 : vector<4x256xf32> to vector<1x4x256xf32>
    tpu.vector_store %arg8[%c0_65, %c0_66, %c0_67], %407 {strides = array<i32>} : memref<1x4x256xf32, #tpu.memory_space<vmem>>, vector<1x4x256xf32>,
    return
  }
  func.func @transform_0(%arg0: i32) -> (i32, i32, i32) {
    %c0_i32 = arith.constant 0 : i32
    %c0_i32_0 = arith.constant 0 : i32
    %c0_i32_1 = arith.constant 0 : i32
    return %arg0, %c0_i32, %c0_i32_0 : i32, i32, i32
  }
  func.func @transform_1(%arg0: i32) -> (i32, i32) {
    %c0_i32 = arith.constant 0 : i32
    %c0_i32_0 = arith.constant 0 : i32
    %c0_i32_1 = arith.constant 0 : i32
    return %c0_i32, %c0_i32_0 : i32, i32
  }
  func.func @transform_2(%arg0: i32) -> (i32, i32) {
    %c0_i32 = arith.constant 0 : i32
    %c0_i32_0 = arith.constant 0 : i32
    %c0_i32_1 = arith.constant 0 : i32
    return %c0_i32, %c0_i32_0 : i32, i32
  }
  func.func @transform_3(%arg0: i32) -> (i32, i32) {
    %c0_i32 = arith.constant 0 : i32
    %c0_i32_0 = arith.constant 0 : i32
    %c0_i32_1 = arith.constant 0 : i32
    return %c0_i32, %c0_i32_0 : i32, i32
  }
  func.func @transform_4(%arg0: i32) -> (i32, i32) {
    %c0_i32 = arith.constant 0 : i32
    %c0_i32_0 = arith.constant 0 : i32
    %c0_i32_1 = arith.constant 0 : i32
    return %c0_i32, %c0_i32_0 : i32, i32
  }
  func.func @transform_5(%arg0: i32) -> (i32, i32) {
    %c0_i32 = arith.constant 0 : i32
    %c0_i32_0 = arith.constant 0 : i32
    %c0_i32_1 = arith.constant 0 : i32
    return %c0_i32, %c0_i32_0 : i32, i32
  }
  func.func @transform_6(%arg0: i32) -> (i32, i32) {
    %c0_i32 = arith.constant 0 : i32
    %c0_i32_0 = arith.constant 0 : i32
    %c0_i32_1 = arith.constant 0 : i32
    return %c0_i32, %c0_i32_0 : i32, i32
  }
  func.func @transform_7(%arg0: i32) -> (i32, i32, i32) {
    %c0_i32 = arith.constant 0 : i32
    %c0_i32_0 = arith.constant 0 : i32
    %c0_i32_1 = arith.constant 0 : i32
    return %arg0, %c0_i32, %c0_i32_0 : i32, i32, i32
  }
}

</mosaic_0001>

<llo_original>
// kernel: tpu_custom_call.1
$region0: #{tpu_custom_call.1}
  #allocation0 [shape = 'u32[]', space=smem, size = 0x4, offset = 0x4, fixed_abs, tag = 'smem constant byte address 0x4 - core index']
  #allocation1 [shape = 'u32[144,128]{1,0:T(1,128)}', space=vmem, size = 0x12000, scoped, tag = 'internal scratch']
  #allocation2 [shape = 'f32[4,512]{1,0:T(4,128)}', space=vmem, size = 0x2000, scoped, tag = 'scratch operand']
  %s0 = inlined_call_operand.vmem [shape: f32[2,4,256], index: 0, kind: input, shape index: {}]
  %s1 = inlined_call_operand.vmem [shape: f32[4,49], index: 1, kind: input, shape index: {}]
  %s2 = inlined_call_operand.vmem [shape: f32[4,1], index: 2, kind: input, shape index: {}]
  %s3 = inlined_call_operand.vmem [shape: bf16[16,4], index: 3, kind: input, shape index: {}]
  %s4 = inlined_call_operand.vmem [shape: f32[16,1], index: 4, kind: input, shape index: {}]
  %s5 = inlined_call_operand.vmem [shape: bf16[4,16], index: 5, kind: input, shape index: {}]
  %s6 = inlined_call_operand.vmem [shape: f32[4,1], index: 6, kind: input, shape index: {}]
  %s7 = inlined_call_operand.hbm [shape: f32[2,4,256], index: 7, kind: output, shape index: {}]
  %s8 = sld [smem:[#allocation0]]
  $region61: #{tpu_custom_call.1} parent=0
    _
  %s10 = ssub.s32 1, %s8
  %s11 = scalar_select 0, %s10, %s8
  $region1: #{tpu_custom_call.1} parent=0
    #allocation3 [shape = 'u8[8192]{0}', space=vmem, size = 0x2000, scoped, tag = 'output window, operand 0']
    #allocation4 [shape = 's32[2]{0}', space=sflag, size = 0x8, scoped, tag = 'scoped memory for tpu_custom_call.1']
    %12 = vsyncpa [#allocation4], 0
    %s13 = scalar_lea.sflag [#allocation4], 1
    %14 = vsyncpa %s13, 0
    loop: start=0, step=1, limit=4
    $region2: #{tpu_custom_call.1} parent=1 // loop_pre_header
      _
    $region3: #{tpu_custom_call.1} parent=1 // loop_header
      %s16 = sphi 0, %s20
      %p17 = scmp.ge.s32.totalorder %s16, 4
      %s26 = sphi 0, %s28
      %s29 = sphi 0, %s26
      %s30 = sphi 0, %s29
      %s46 = sphi 0, %s30
      %s50 = sphi 0, %s50
      %s52 = sphi 0, %s50
      %s53 = sphi 0, %s52
      %s67 = sphi 0, %s53
      %s71 = sphi 0, %s71
      %s73 = sphi 0, %s71
      %s74 = sphi 0, %s73
      %s88 = sphi 0, %s74
      %s92 = sphi 0, %s92
      %s94 = sphi 0, %s92
      %s95 = sphi 0, %s94
      %s109 = sphi 0, %s95
      %s113 = sphi 0, %s113
      %s115 = sphi 0, %s113
      %s116 = sphi 0, %s115
      %s130 = sphi 0, %s116
      %s134 = sphi 0, %s134
      %s136 = sphi 0, %s134
      %s137 = sphi 0, %s136
      %s151 = sphi 0, %s137
      %s155 = sphi 0, %s155
      %s157 = sphi 0, %s155
      %s158 = sphi 0, %s157
      %s172 = sphi 0, %s158
      %s178 = sphi 0, %s180
      %s181 = sphi 0, %s178
      %s182 = sphi 0, %s181
      %s198 = sphi 0, %s182
    $region4: #{tpu_custom_call.1} parent=1 // loop_header_branch
      %19 = sbr.rel (%p17) target = $region8
    $region5: #{tpu_custom_call.1} parent=1 // loop_body
      %s21 = ssub.s32 %s16, 1
      %s22 = ssub.s32 %s16, 2
      %s23 = sadd.s32 %s16, 1
      %s24 = ssub.s32 %s16, %s23
      %p25 = scmp.eq.s32.totalorder %s24, 0
      %s27 = sadd.s32 %s26, 1
      %s28 = scalar_select %p25, %s26, %s27
      %p31 = pneg %p25
      %p32 = scmp.eq.s32.totalorder %s16, 1
      %p33 = por %p31, %p32
      %p34 = scmp.ne.s32.totalorder %s26, %s29
      %p35 = scmp.eq.s32.totalorder %s16, 0
      %p36 = por %p34, %p35
      %p37 = scmp.ne.s32.totalorder %s26, %s29
      %p38 = scmp.eq.s32.totalorder %s21, 1
      %p39 = por %p37, %p38
      %p40 = scmp.ne.s32.totalorder %s29, %s30
      %p41 = scmp.eq.s32.totalorder %s21, 0
      %p42 = por %p40, %p41
      %p43 = scmp.ne.s32.totalorder %s29, %s30
      %p44 = scmp.eq.s32.totalorder %s22, 1
      %p45 = por %p43, %p44
      %p47 = scmp.ne.s32.totalorder %s30, %s46
      %p48 = scmp.eq.s32.totalorder %s22, 0
      %p49 = por %p47, %p48
      %s51 = sadd.s32 %s50, 1
      %p54 = scmp.eq.s32.totalorder %s16, 1
      %p55 = scmp.ne.s32.totalorder %s50, %s52
      %p56 = scmp.eq.s32.totalorder %s16, 0
      %p57 = por %p55, %p56
      %p58 = scmp.ne.s32.totalorder %s50, %s52
      %p59 = scmp.eq.s32.totalorder %s21, 1
      %p60 = por %p58, %p59
      %p61 = scmp.ne.s32.totalorder %s52, %s53
      %p62 = scmp.eq.s32.totalorder %s21, 0
      %p63 = por %p61, %p62
      %p64 = scmp.ne.s32.totalorder %s52, %s53
      %p65 = scmp.eq.s32.totalorder %s22, 1
      %p66 = por %p64, %p65
      %p68 = scmp.ne.s32.totalorder %s53, %s67
      %p69 = scmp.eq.s32.totalorder %s22, 0
      %p70 = por %p68, %p69
      %s72 = sadd.s32 %s71, 1
      %p75 = scmp.eq.s32.totalorder %s16, 1
      %p76 = scmp.ne.s32.totalorder %s71, %s73
      %p77 = scmp.eq.s32.totalorder %s16, 0
      %p78 = por %p76, %p77
      %p79 = scmp.ne.s32.totalorder %s71, %s73
      %p80 = scmp.eq.s32.totalorder %s21, 1
      %p81 = por %p79, %p80
      %p82 = scmp.ne.s32.totalorder %s73, %s74
      %p83 = scmp.eq.s32.totalorder %s21, 0
      %p84 = por %p82, %p83
      %p85 = scmp.ne.s32.totalorder %s73, %s74
      %p86 = scmp.eq.s32.totalorder %s22, 1
      %p87 = por %p85, %p86
      %p89 = scmp.ne.s32.totalorder %s74, %s88
      %p90 = scmp.eq.s32.totalorder %s22, 0
      %p91 = por %p89, %p90
      %s93 = sadd.s32 %s92, 1
      %p96 = scmp.eq.s32.totalorder %s16, 1
      %p97 = scmp.ne.s32.totalorder %s92, %s94
      %p98 = scmp.eq.s32.totalorder %s16, 0
      %p99 = por %p97, %p98
      %p100 = scmp.ne.s32.totalorder %s92, %s94
      %p101 = scmp.eq.s32.totalorder %s21, 1
      %p102 = por %p100, %p101
      %p103 = scmp.ne.s32.totalorder %s94, %s95
      %p104 = scmp.eq.s32.totalorder %s21, 0
      %p105 = por %p103, %p104
      %p106 = scmp.ne.s32.totalorder %s94, %s95
      %p107 = scmp.eq.s32.totalorder %s22, 1
      %p108 = por %p106, %p107
      %p110 = scmp.ne.s32.totalorder %s95, %s109
      %p111 = scmp.eq.s32.totalorder %s22, 0
      %p112 = por %p110, %p111
      %s114 = sadd.s32 %s113, 1
      %p117 = scmp.eq.s32.totalorder %s16, 1
      %p118 = scmp.ne.s32.totalorder %s113, %s115
      %p119 = scmp.eq.s32.totalorder %s16, 0
      %p120 = por %p118, %p119
      %p121 = scmp.ne.s32.totalorder %s113, %s115
      %p122 = scmp.eq.s32.totalorder %s21, 1
      %p123 = por %p121, %p122
      %p124 = scmp.ne.s32.totalorder %s115, %s116
      %p125 = scmp.eq.s32.totalorder %s21, 0
      %p126 = por %p124, %p125
      %p127 = scmp.ne.s32.totalorder %s115, %s116
      %p128 = scmp.eq.s32.totalorder %s22, 1
      %p129 = por %p127, %p128
      %p131 = scmp.ne.s32.totalorder %s116, %s130
      %p132 = scmp.eq.s32.totalorder %s22, 0
      %p133 = por %p131, %p132
      %s135 = sadd.s32 %s134, 1
      %p138 = scmp.eq.s32.totalorder %s16, 1
      %p139 = scmp.ne.s32.totalorder %s134, %s136
      %p140 = scmp.eq.s32.totalorder %s16, 0
      %p141 = por %p139, %p140
      %p142 = scmp.ne.s32.totalorder %s134, %s136
      %p143 = scmp.eq.s32.totalorder %s21, 1
      %p144 = por %p142, %p143
      %p145 = scmp.ne.s32.totalorder %s136, %s137
      %p146 = scmp.eq.s32.totalorder %s21, 0
      %p147 = por %p145, %p146
      %p148 = scmp.ne.s32.totalorder %s136, %s137
      %p149 = scmp.eq.s32.totalorder %s22, 1
      %p150 = por %p148, %p149
      %p152 = scmp.ne.s32.totalorder %s137, %s151
      %p153 = scmp.eq.s32.totalorder %s22, 0
      %p154 = por %p152, %p153
      %s156 = sadd.s32 %s155, 1
      %p159 = scmp.eq.s32.totalorder %s16, 1
      %p160 = scmp.ne.s32.totalorder %s155, %s157
      %p161 = scmp.eq.s32.totalorder %s16, 0
      %p162 = por %p160, %p161
      %p163 = scmp.ne.s32.totalorder %s155, %s157
      %p164 = scmp.eq.s32.totalorder %s21, 1
      %p165 = por %p163, %p164
      %p166 = scmp.ne.s32.totalorder %s157, %s158
      %p167 = scmp.eq.s32.totalorder %s21, 0
      %p168 = por %p166, %p167
      %p169 = scmp.ne.s32.totalorder %s157, %s158
      %p170 = scmp.eq.s32.totalorder %s22, 1
      %p171 = por %p169, %p170
      %p173 = scmp.ne.s32.totalorder %s158, %s172
      %p174 = scmp.eq.s32.totalorder %s22, 0
      %p175 = por %p173, %p174
      %s176 = ssub.s32 %s16, %s23
      %p177 = scmp.eq.s32.totalorder %s176, 0
      %s179 = sadd.s32 %s178, 1
      %s180 = scalar_select %p177, %s178, %s179
      %p183 = pneg %p177
      %p184 = scmp.eq.s32.totalorder %s16, 1
      %p185 = por %p183, %p184
      %p186 = scmp.ne.s32.totalorder %s178, %s181
      %p187 = scmp.eq.s32.totalorder %s16, 0
      %p188 = por %p186, %p187
      %p189 = scmp.ne.s32.totalorder %s178, %s181
      %p190 = scmp.eq.s32.totalorder %s21, 1
      %p191 = por %p189, %p190
      %p192 = scmp.ne.s32.totalorder %s181, %s182
      %p193 = scmp.eq.s32.totalorder %s21, 0
      %p194 = por %p192, %p193
      %p195 = scmp.ne.s32.totalorder %s181, %s182
      %p196 = scmp.eq.s32.totalorder %s22, 1
      %p197 = por %p195, %p196
      %p199 = scmp.ne.s32.totalorder %s182, %s198
      %p200 = scmp.eq.s32.totalorder %s22, 0
      %p201 = por %p199, %p200
      %p202 = scmp.le.s32.totalorder 1, %s16
      %p203 = scmp.lt.s32.totalorder %s16, 3
      %p204 = pnand %p202, %p203
      %p205 = pneg %p204
      // Predicated region
      $region9: #{tpu_custom_call.1} parent=5 // pred_check
        _
      $region10: #{tpu_custom_call.1} parent=5 // pred_check_branch
        %207 = sbr.rel (%p204) target = $region12
      $region11: #{tpu_custom_call.1} parent=5 // pred_region
        %s208 = ssub.s32 %s16, 1
        // Predicated region
        $region13: #{tpu_custom_call.1} parent=11 // pred_check
          %p209 = pneg %p63
        $region14: #{tpu_custom_call.1} parent=11 // pred_check_branch
          %211 = sbr.rel (%p209) target = $region16
        $region15: #{tpu_custom_call.1} parent=11 // pred_region
          _
        $region16: #{tpu_custom_call.1} parent=11 // pred_fallthru
          _
        // Predicated region
        $region17: #{tpu_custom_call.1} parent=11 // pred_check
          %p212 = pneg %p84
        $region18: #{tpu_custom_call.1} parent=11 // pred_check_branch
          %214 = sbr.rel (%p212) target = $region20
        $region19: #{tpu_custom_call.1} parent=11 // pred_region
          _
        $region20: #{tpu_custom_call.1} parent=11 // pred_fallthru
          _
        // Predicated region
        $region21: #{tpu_custom_call.1} parent=11 // pred_check
          %p215 = pneg %p105
        $region22: #{tpu_custom_call.1} parent=11 // pred_check_branch
          %217 = sbr.rel (%p215) target = $region24
        $region23: #{tpu_custom_call.1} parent=11 // pred_region
          _
        $region24: #{tpu_custom_call.1} parent=11 // pred_fallthru
          _
        // Predicated region
        $region25: #{tpu_custom_call.1} parent=11 // pred_check
          %p218 = pneg %p126
        $region26: #{tpu_custom_call.1} parent=11 // pred_check_branch
          %220 = sbr.rel (%p218) target = $region28
        $region27: #{tpu_custom_call.1} parent=11 // pred_region
          _
        $region28: #{tpu_custom_call.1} parent=11 // pred_fallthru
          _
        // Predicated region
        $region29: #{tpu_custom_call.1} parent=11 // pred_check
          %p221 = pneg %p147
        $region30: #{tpu_custom_call.1} parent=11 // pred_check_branch
          %223 = sbr.rel (%p221) target = $region32
        $region31: #{tpu_custom_call.1} parent=11 // pred_region
          _
        $region32: #{tpu_custom_call.1} parent=11 // pred_fallthru
          _
        // Predicated region
        $region33: #{tpu_custom_call.1} parent=11 // pred_check
          %p224 = pneg %p168
        $region34: #{tpu_custom_call.1} parent=11 // pred_check_branch
          %226 = sbr.rel (%p224) target = $region36
        $region35: #{tpu_custom_call.1} parent=11 // pred_region
          _
        $region36: #{tpu_custom_call.1} parent=11 // pred_fallthru
          _
      $region12: #{tpu_custom_call.1} parent=5 // pred_fallthru
        _
      %p227 = scmp.lt.s32.totalorder %s16, 2
      // Predicated region
      $region37: #{tpu_custom_call.1} parent=5 // pred_check
        %p228 = pneg %p227
      $region38: #{tpu_custom_call.1} parent=5 // pred_check_branch
        %230 = sbr.rel (%p228) target = $region40
      $region39: #{tpu_custom_call.1} parent=5 // pred_region
        // Predicated region
        $region41: #{tpu_custom_call.1} parent=39 // pred_check
          %p231 = pneg %p36
        $region42: #{tpu_custom_call.1} parent=39 // pred_check_branch
          %233 = sbr.rel (%p231) target = $region44
        $region43: #{tpu_custom_call.1} parent=39 // pred_region
          %p234 = scmp.lt.s32.totalorder %s16, 1
          %s235 = scalar_select %p234, %s16, 1
          %s236 = smul.addr %s235, 2
          %s237 = smul.addr %s236, 4
          %s238 = scalar_lea.vmem %s0, %s237
        $region44: #{tpu_custom_call.1} parent=39 // pred_fallthru
          _
      $region40: #{tpu_custom_call.1} parent=5 // pred_fallthru
        _
      %p239 = scmp.le.s32.totalorder 1, %s16
      %p240 = scmp.lt.s32.totalorder %s16, 3
      %p241 = pnand %p239, %p240
      %p242 = pneg %p241
      // Predicated region
      $region45: #{tpu_custom_call.1} parent=5 // pred_check
        _
      $region46: #{tpu_custom_call.1} parent=5 // pred_check_branch
        %244 = sbr.rel (%p241) target = $region48
      $region47: #{tpu_custom_call.1} parent=5 // pred_region
        %s245 = ssub.s32 %s16, 1
        %p246 = scmp.lt.s32.totalorder %s21, 1
        %s247 = scalar_select %p246, %s21, 1
        %s248 = smul.addr %s247, 2
        %s249 = smul.addr %s248, 4
        %s250 = scalar_lea.vmem %s0, %s249
        %p251 = pneg %p42
        %p252 = pneg %p39
        %p253 = pneg %p63
        %p254 = pneg %p60
        %p255 = pneg %p84
        %p256 = pneg %p81
        %p257 = pneg %p105
        %p258 = pneg %p102
        %p259 = pneg %p126
        %p260 = pneg %p123
        %p261 = pneg %p147
        %p262 = pneg %p144
        %p263 = pneg %p168
        %p264 = pneg %p165
        %p265 = pneg %p194
        %p266 = pneg %p191
        %s267 = sand.u32 %s181, 1
        %s268 = scalar_lea.sflag [#allocation4], %s267
        %s269 = sand.u32 %s181, 1
        %s270 = smul.addr %s269, 8
        %s271 = scalar_lea.vmem [#allocation3], %s270
        %p272 = scmp.lt.s32.totalorder %s21, 1
        %s273 = scalar_select %p272, %s21, 1
        %s274 = smul.addr %s273, 2
        %s275 = smul.addr %s274, 4
        %s276 = scalar_lea.vmem %s0, %s275
        %v278 = vld [vmem:[%s276] sm:$0xff]
        %279 = vst [vmem:[#allocation2] sm:$0xf] 0.0
        %280 = vst [vmem:[#allocation2 + $0xc] sm:$0xf] 0.0
        %281 = vst [vmem:[#allocation2 + $0x4] sm:$0xff] %v278
        %v282 = vld [vmem:[#allocation2] sm:$0xff]
        %v283 = vld [vmem:[#allocation2 + $0x8] sm:$0xff]
        %v284 = vlaneseq
        %v285 = vand.u32 %v284, 127
        %v286 = vadd.s32 %v285, 128
        %vm287 = vcmp.lt.s32.totalorder %v285, 0
        %v288 = vsub.s32 0, %v285
        %v289 = vsel %vm287, %v288, %v285
        %v290 = vshrl.u32 %v289, 4
        %v291 = vand.u32 %v289, 15
        %v292 = vsub.s32 0, %v291
        %v293 = vsel %vm287, %v292, %v291
        %vm294 = vcmp.lt.s32.totalorder %v286, 0
        %v295 = vsub.s32 0, %v286
        %v296 = vsel %vm294, %v295, %v286
        %v297 = vshrl.u32 %v296, 4
        %v298 = vand.u32 %v296, 15
        %v299 = vsub.s32 0, %v298
        %v300 = vsel %vm294, %v299, %v298
        %vm301 = vcmp.ne.s32.totalorder %v293, 0
        %vm302 = vcmp.ne.s32.totalorder %v300, 0
        %vm303 = vcmp.lt.s32.totalorder %v293, 0
        %vm304 = vcmp.lt.s32.totalorder %v300, 0
        %vm305 = vmand %vm303, %vm301
        %vm306 = vmand %vm304, %vm302
        %v307 = vadd.s32 %v293, 16
        %v308 = vadd.s32 %v300, 16
        %v309 = vsel %vm305, %v307, %v293
        %v310 = vsel %vm306, %v308, %v300
        %v311 = vld [vmem:[%s1] sm:$0xf]
        %313 = vset.pattern.permute.xlu0 0
        %314 = vperm.xlu0 %313, %v311
        %v315 = vpop.permute.xlu0 %314
        %v317 = vunpack.c.l.s4 839922192
        %v318 = vunpack.c.0.s8 %v317
        %v319 = vlaneseq
        %v320 = vshrl.u32 %v319, 7
        %v321 = vsub.s32 %v318, %v320
        %v322 = vrot.slane %v315, %v321
        %v324 = vmul.f32 %v282, %v322
        %v325 = vmul.f32 %v283, %v322
        %326 = vset.pattern.permute.xlu0 7
        %327 = vperm.xlu0 %326, %v311
        %v328 = vpop.permute.xlu0 %327
        %v330 = vunpack.c.l.s4 839922192
        %v331 = vunpack.c.0.s8 %v330
        %v332 = vlaneseq
        %v333 = vshrl.u32 %v332, 7
        %v334 = vsub.s32 %v331, %v333
        %v335 = vrot.slane %v328, %v334
        %v337 = vmul.f32 %v282, %v335
        %v338 = vmul.f32 %v283, %v335
        %341 = vrot.lane.b32.xlu0 %v337, 112
        %v342 = vpop.permute.xlu0 %341
        %343 = vrot.lane.b32.xlu0 %v338, 112
        %v344 = vpop.permute.xlu0 %343
        %v345 = vrot.slane %v342, 4
        %v346 = vrot.slane %v344, 4
        %vm347 = vcmask 1043456
        %v348 = vsel %vm347, %v345, %v346
        %vm349 = vcmask 916480
        %v350 = vsel %vm349, %v342, %v348
        %v353 = vadd.f32 %v324, %v350
        %v354 = vadd.f32 %v325, %v344
        %355 = vset.pattern.permute.xlu0 14
        %356 = vperm.xlu0 %355, %v311
        %v357 = vpop.permute.xlu0 %356
        %v359 = vunpack.c.l.s4 839922192
        %v360 = vunpack.c.0.s8 %v359
        %v361 = vlaneseq
        %v362 = vshrl.u32 %v361, 7
        %v363 = vsub.s32 %v360, %v362
        %v364 = vrot.slane %v357, %v363
        %v366 = vmul.f32 %v282, %v364
        %v367 = vmul.f32 %v283, %v364
        %370 = vrot.lane.b32.xlu0 %v366, 96
        %v371 = vpop.permute.xlu0 %370
        %372 = vrot.lane.b32.xlu0 %v367, 96
        %v373 = vpop.permute.xlu0 %372
        %v374 = vrot.slane %v371, 4
        %v375 = vrot.slane %v373, 4
        %v376 = vsel %vm347, %v374, %v375
        %vm377 = vcmask 785408
        %v378 = vsel %vm377, %v371, %v376
        %v381 = vadd.f32 %v353, %v378
        %v382 = vadd.f32 %v354, %v373
        %383 = vset.pattern.permute.xlu0 21
        %384 = vperm.xlu0 %383, %v311
        %v385 = vpop.permute.xlu0 %384
        %v387 = vunpack.c.l.s4 839922192
        %v388 = vunpack.c.0.s8 %v387
        %v389 = vlaneseq
        %v390 = vshrl.u32 %v389, 7
        %v391 = vsub.s32 %v388, %v390
        %v392 = vrot.slane %v385, %v391
        %v394 = vmul.f32 %v282, %v392
        %v395 = vmul.f32 %v283, %v392
        %398 = vrot.lane.b32.xlu0 %v394, 80
        %v399 = vpop.permute.xlu0 %398
        %400 = vrot.lane.b32.xlu0 %v395, 80
        %v401 = vpop.permute.xlu0 %400
        %v402 = vrot.slane %v399, 4
        %v403 = vrot.slane %v401, 4
        %v404 = vsel %vm347, %v402, %v403
        %vm405 = vcmask 654336
        %v406 = vsel %vm405, %v399, %v404
        %v409 = vadd.f32 %v381, %v406
        %v410 = vadd.f32 %v382, %v401
        %411 = vset.pattern.permute.xlu0 28
        %412 = vperm.xlu0 %411, %v311
        %v413 = vpop.permute.xlu0 %412
        %416 = vrot.lane.b32.xlu0 %v282, 115
        %v417 = vpop.permute.xlu0 %416
        %418 = vrot.lane.b32.xlu0 %v283, 115
        %v419 = vpop.permute.xlu0 %418
        %v420 = vrot.slane %v417, 4
        %v421 = vrot.slane %v419, 4
        %v422 = vsel %vm347, %v420, %v421
        %vm423 = vcmask 941056
        %v424 = vsel %vm423, %v422, %v419
        %v427 = vunpack.c.l.s4 839922192
        %v428 = vunpack.c.0.s8 %v427
        %v429 = vlaneseq
        %v430 = vshrl.u32 %v429, 7
        %v431 = vsub.s32 %v428, %v430
        %v432 = vrot.slane %v413, %v431
        %v434 = vmul.f32 %v424, %v432
        %436 = vrot.lane.b32.xlu0 %v434, 77
        %v437 = vpop.permute.xlu0 %436
        %v438 = vrot.slane %v437, 4
        %vm439 = vcmask 629760
        %v440 = vsel %vm439, %v438, %v437
        %v443 = vadd.f32 %v409, %v440
        %v444 = vadd.f32 %v410, %v438
        %445 = vset.pattern.permute.xlu0 35
        %446 = vperm.xlu0 %445, %v311
        %v447 = vpop.permute.xlu0 %446
        %448 = vrot.lane.b32.xlu0 %v282, 99
        %v449 = vpop.permute.xlu0 %448
        %450 = vrot.lane.b32.xlu0 %v283, 99
        %v451 = vpop.permute.xlu0 %450
        %v452 = vrot.slane %v449, 4
        %v453 = vrot.slane %v451, 4
        %v454 = vsel %vm347, %v452, %v453
        %vm455 = vcmask 809984
        %v456 = vsel %vm455, %v454, %v451
        %v459 = vunpack.c.l.s4 839922192
        %v460 = vunpack.c.0.s8 %v459
        %v461 = vlaneseq
        %v462 = vshrl.u32 %v461, 7
        %v463 = vsub.s32 %v460, %v462
        %v464 = vrot.slane %v447, %v463
        %v466 = vmul.f32 %v456, %v464
        %468 = vrot.lane.b32.xlu0 %v466, 77
        %v469 = vpop.permute.xlu0 %468
        %v470 = vrot.slane %v469, 4
        %v471 = vsel %vm439, %v470, %v469
        %v474 = vadd.f32 %v443, %v471
        %v475 = vadd.f32 %v444, %v470
        %476 = vset.pattern.permute.xlu0 42
        %477 = vperm.xlu0 %476, %v311
        %v478 = vpop.permute.xlu0 %477
        %479 = vrot.lane.b32.xlu0 %v282, 83
        %v480 = vpop.permute.xlu0 %479
        %481 = vrot.lane.b32.xlu0 %v283, 83
        %v482 = vpop.permute.xlu0 %481
        %v483 = vrot.slane %v480, 4
        %v484 = vrot.slane %v482, 4
        %v485 = vsel %vm347, %v483, %v484
        %vm486 = vcmask 678912
        %v487 = vsel %vm486, %v485, %v482
        %v490 = vunpack.c.l.s4 839922192
        %v491 = vunpack.c.0.s8 %v490
        %v492 = vlaneseq
        %v493 = vshrl.u32 %v492, 7
        %v494 = vsub.s32 %v491, %v493
        %v495 = vrot.slane %v478, %v494
        %v497 = vmul.f32 %v487, %v495
        %499 = vrot.lane.b32.xlu0 %v497, 77
        %v500 = vpop.permute.xlu0 %499
        %v501 = vrot.slane %v500, 4
        %v502 = vsel %vm439, %v501, %v500
        %v505 = vadd.f32 %v474, %v502
        %v506 = vadd.f32 %v475, %v501
        %v507 = vadd.s32 %v309, 4294967293
        %v508 = vadd.s32 %v310, 4294967293
        %vm509 = vcmp.ge.s32.totalorder %v507, 0
        %vm510 = vcmp.ge.s32.totalorder %v508, 0
        %vm511 = vcmp.lt.s32.totalorder %v507, 16
        %vm512 = vcmp.lt.s32.totalorder %v508, 16
        %vm513 = vmand %vm509, %vm511
        %vm514 = vmand %vm510, %vm512
        %v515 = vsel %vm513, 1, 0
        %v516 = vsel %vm514, 1, 0
        %vm517 = vcmp.eq.s32.totalorder %v515, 1
        %vm518 = vcmp.eq.s32.totalorder %v516, 1
        %v521 = vcombine.high %v505, %v505
        %522 = vrot.lane.b32.xlu0 %v505, 51
        %v523 = vpop.permute.xlu0 %522
        %524 = vrot.lane.b32.xlu0 %v521, 51
        %v525 = vpop.permute.xlu0 %524
        %526 = vrot.lane.b32.xlu0 %v506, 51
        %v527 = vpop.permute.xlu0 %526
        %vm528 = vcmask 416768
        %v529 = vsel %vm528, %v523, %v525
        %v530 = vsel %vm528, %v525, %v527
        %v533 = vsel %vm517, %v529, 0.0
        %v534 = vsel %vm518, %v530, 0.0
        %535 = vset.pattern.permute.xlu0 1
        %536 = vperm.xlu0 %535, %v311
        %v537 = vpop.permute.xlu0 %536
        %v539 = vunpack.c.l.s4 839922192
        %v540 = vunpack.c.0.s8 %v539
        %v541 = vlaneseq
        %v542 = vshrl.u32 %v541, 7
        %v543 = vsub.s32 %v540, %v542
        %v544 = vrot.slane %v537, %v543
        %v546 = vmul.f32 %v282, %v544
        %v547 = vmul.f32 %v283, %v544
        %548 = vset.pattern.permute.xlu0 8
        %549 = vperm.xlu0 %548, %v311
        %v550 = vpop.permute.xlu0 %549
        %v552 = vunpack.c.l.s4 839922192
        %v553 = vunpack.c.0.s8 %v552
        %v554 = vlaneseq
        %v555 = vshrl.u32 %v554, 7
        %v556 = vsub.s32 %v553, %v555
        %v557 = vrot.slane %v550, %v556
        %v559 = vmul.f32 %v282, %v557
        %v560 = vmul.f32 %v283, %v557
        %563 = vrot.lane.b32.xlu0 %v559, 112
        %v564 = vpop.permute.xlu0 %563
        %565 = vrot.lane.b32.xlu0 %v560, 112
        %v566 = vpop.permute.xlu0 %565
        %v567 = vrot.slane %v564, 4
        %v568 = vrot.slane %v566, 4
        %v569 = vsel %vm347, %v567, %v568
        %v570 = vsel %vm349, %v564, %v569
        %v573 = vadd.f32 %v546, %v570
        %v574 = vadd.f32 %v547, %v566
        %575 = vset.pattern.permute.xlu0 15
        %576 = vperm.xlu0 %575, %v311
        %v577 = vpop.permute.xlu0 %576
        %v579 = vunpack.c.l.s4 839922192
        %v580 = vunpack.c.0.s8 %v579
        %v581 = vlaneseq
        %v582 = vshrl.u32 %v581, 7
        %v583 = vsub.s32 %v580, %v582
        %v584 = vrot.slane %v577, %v583
        %v586 = vmul.f32 %v282, %v584
        %v587 = vmul.f32 %v283, %v584
        %590 = vrot.lane.b32.xlu0 %v586, 96
        %v591 = vpop.permute.xlu0 %590
        %592 = vrot.lane.b32.xlu0 %v587, 96
        %v593 = vpop.permute.xlu0 %592
        %v594 = vrot.slane %v591, 4
        %v595 = vrot.slane %v593, 4
        %v596 = vsel %vm347, %v594, %v595
        %v597 = vsel %vm377, %v591, %v596
        %v600 = vadd.f32 %v573, %v597
        %v601 = vadd.f32 %v574, %v593
        %602 = vset.pattern.permute.xlu0 22
        %603 = vperm.xlu0 %602, %v311
        %v604 = vpop.permute.xlu0 %603
        %v606 = vunpack.c.l.s4 839922192
        %v607 = vunpack.c.0.s8 %v606
        %v608 = vlaneseq
        %v609 = vshrl.u32 %v608, 7
        %v610 = vsub.s32 %v607, %v609
        %v611 = vrot.slane %v604, %v610
        %v613 = vmul.f32 %v282, %v611
        %v614 = vmul.f32 %v283, %v611
        %617 = vrot.lane.b32.xlu0 %v613, 80
        %v618 = vpop.permute.xlu0 %617
        %619 = vrot.lane.b32.xlu0 %v614, 80
        %v620 = vpop.permute.xlu0 %619
        %v621 = vrot.slane %v618, 4
        %v622 = vrot.slane %v620, 4
        %v623 = vsel %vm347, %v621, %v622
        %v624 = vsel %vm405, %v618, %v623
        %v627 = vadd.f32 %v600, %v624
        %v628 = vadd.f32 %v601, %v620
        %629 = vset.pattern.permute.xlu0 29
        %630 = vperm.xlu0 %629, %v311
        %v631 = vpop.permute.xlu0 %630
        %632 = vrot.lane.b32.xlu0 %v282, 114
        %v633 = vpop.permute.xlu0 %632
        %634 = vrot.lane.b32.xlu0 %v283, 114
        %v635 = vpop.permute.xlu0 %634
        %v636 = vrot.slane %v633, 4
        %v637 = vrot.slane %v635, 4
        %v638 = vsel %vm347, %v636, %v637
        %vm639 = vcmask 932864
        %v640 = vsel %vm639, %v638, %v635
        %v643 = vunpack.c.l.s4 839922192
        %v644 = vunpack.c.0.s8 %v643
        %v645 = vlaneseq
        %v646 = vshrl.u32 %v645, 7
        %v647 = vsub.s32 %v644, %v646
        %v648 = vrot.slane %v631, %v647
        %v650 = vmul.f32 %v640, %v648
        %652 = vrot.lane.b32.xlu0 %v650, 78
        %v653 = vpop.permute.xlu0 %652
        %v654 = vrot.slane %v653, 4
        %vm655 = vcmask 637952
        %v656 = vsel %vm655, %v654, %v653
        %v659 = vadd.f32 %v627, %v656
        %v660 = vadd.f32 %v628, %v654
        %661 = vset.pattern.permute.xlu0 36
        %662 = vperm.xlu0 %661, %v311
        %v663 = vpop.permute.xlu0 %662
        %664 = vrot.lane.b32.xlu0 %v282, 98
        %v665 = vpop.permute.xlu0 %664
        %666 = vrot.lane.b32.xlu0 %v283, 98
        %v667 = vpop.permute.xlu0 %666
        %v668 = vrot.slane %v665, 4
        %v669 = vrot.slane %v667, 4
        %v670 = vsel %vm347, %v668, %v669
        %vm671 = vcmask 801792
        %v672 = vsel %vm671, %v670, %v667
        %v675 = vunpack.c.l.s4 839922192
        %v676 = vunpack.c.0.s8 %v675
        %v677 = vlaneseq
        %v678 = vshrl.u32 %v677, 7
        %v679 = vsub.s32 %v676, %v678
        %v680 = vrot.slane %v663, %v679
        %v682 = vmul.f32 %v672, %v680
        %684 = vrot.lane.b32.xlu0 %v682, 78
        %v685 = vpop.permute.xlu0 %684
        %v686 = vrot.slane %v685, 4
        %v687 = vsel %vm655, %v686, %v685
        %v690 = vadd.f32 %v659, %v687
        %v691 = vadd.f32 %v660, %v686
        %692 = vset.pattern.permute.xlu0 43
        %693 = vperm.xlu0 %692, %v311
        %v694 = vpop.permute.xlu0 %693
        %695 = vrot.lane.b32.xlu0 %v282, 82
        %v696 = vpop.permute.xlu0 %695
        %697 = vrot.lane.b32.xlu0 %v283, 82
        %v698 = vpop.permute.xlu0 %697
        %v699 = vrot.slane %v696, 4
        %v700 = vrot.slane %v698, 4
        %v701 = vsel %vm347, %v699, %v700
        %vm702 = vcmask 670720
        %v703 = vsel %vm702, %v701, %v698
        %v706 = vunpack.c.l.s4 839922192
        %v707 = vunpack.c.0.s8 %v706
        %v708 = vlaneseq
        %v709 = vshrl.u32 %v708, 7
        %v710 = vsub.s32 %v707, %v709
        %v711 = vrot.slane %v694, %v710
        %v713 = vmul.f32 %v703, %v711
        %715 = vrot.lane.b32.xlu0 %v713, 78
        %v716 = vpop.permute.xlu0 %715
        %v717 = vrot.slane %v716, 4
        %v718 = vsel %vm655, %v717, %v716
        %v721 = vadd.f32 %v690, %v718
        %v722 = vadd.f32 %v691, %v717
        %v723 = vadd.s32 %v309, 4294967294
        %v724 = vadd.s32 %v310, 4294967294
        %vm725 = vcmp.ge.s32.totalorder %v723, 0
        %vm726 = vcmp.ge.s32.totalorder %v724, 0
        %vm727 = vcmp.lt.s32.totalorder %v723, 16
        %vm728 = vcmp.lt.s32.totalorder %v724, 16
        %vm729 = vmand %vm725, %vm727
        %vm730 = vmand %vm726, %vm728
        %v731 = vsel %vm729, 1, 0
        %v732 = vsel %vm730, 1, 0
        %vm733 = vcmp.eq.s32.totalorder %v731, 1
        %vm734 = vcmp.eq.s32.totalorder %v732, 1
        %v737 = vcombine.high %v721, %v721
        %738 = vrot.lane.b32.xlu0 %v721, 50
        %v739 = vpop.permute.xlu0 %738
        %740 = vrot.lane.b32.xlu0 %v737, 50
        %v741 = vpop.permute.xlu0 %740
        %742 = vrot.lane.b32.xlu0 %v722, 50
        %v743 = vpop.permute.xlu0 %742
        %vm744 = vcmask 408576
        %v745 = vsel %vm744, %v739, %v741
        %v746 = vsel %vm744, %v741, %v743
        %v749 = vsel %vm733, %v745, 0.0
        %v750 = vsel %vm734, %v746, 0.0
        %751 = vset.pattern.permute.xlu0 2
        %752 = vperm.xlu0 %751, %v311
        %v753 = vpop.permute.xlu0 %752
        %v755 = vunpack.c.l.s4 839922192
        %v756 = vunpack.c.0.s8 %v755
        %v757 = vlaneseq
        %v758 = vshrl.u32 %v757, 7
        %v759 = vsub.s32 %v756, %v758
        %v760 = vrot.slane %v753, %v759
        %v762 = vmul.f32 %v282, %v760
        %v763 = vmul.f32 %v283, %v760
        %764 = vset.pattern.permute.xlu0 9
        %765 = vperm.xlu0 %764, %v311
        %v766 = vpop.permute.xlu0 %765
        %v768 = vunpack.c.l.s4 839922192
        %v769 = vunpack.c.0.s8 %v768
        %v770 = vlaneseq
        %v771 = vshrl.u32 %v770, 7
        %v772 = vsub.s32 %v769, %v771
        %v773 = vrot.slane %v766, %v772
        %v775 = vmul.f32 %v282, %v773
        %v776 = vmul.f32 %v283, %v773
        %779 = vrot.lane.b32.xlu0 %v775, 112
        %v780 = vpop.permute.xlu0 %779
        %781 = vrot.lane.b32.xlu0 %v776, 112
        %v782 = vpop.permute.xlu0 %781
        %v783 = vrot.slane %v780, 4
        %v784 = vrot.slane %v782, 4
        %v785 = vsel %vm347, %v783, %v784
        %v786 = vsel %vm349, %v780, %v785
        %v789 = vadd.f32 %v762, %v786
        %v790 = vadd.f32 %v763, %v782
        %791 = vset.pattern.permute.xlu0 16
        %792 = vperm.xlu0 %791, %v311
        %v793 = vpop.permute.xlu0 %792
        %v795 = vunpack.c.l.s4 839922192
        %v796 = vunpack.c.0.s8 %v795
        %v797 = vlaneseq
        %v798 = vshrl.u32 %v797, 7
        %v799 = vsub.s32 %v796, %v798
        %v800 = vrot.slane %v793, %v799
        %v802 = vmul.f32 %v282, %v800
        %v803 = vmul.f32 %v283, %v800
        %806 = vrot.lane.b32.xlu0 %v802, 96
        %v807 = vpop.permute.xlu0 %806
        %808 = vrot.lane.b32.xlu0 %v803, 96
        %v809 = vpop.permute.xlu0 %808
        %v810 = vrot.slane %v807, 4
        %v811 = vrot.slane %v809, 4
        %v812 = vsel %vm347, %v810, %v811
        %v813 = vsel %vm377, %v807, %v812
        %v816 = vadd.f32 %v789, %v813
        %v817 = vadd.f32 %v790, %v809
        %818 = vset.pattern.permute.xlu0 23
        %819 = vperm.xlu0 %818, %v311
        %v820 = vpop.permute.xlu0 %819
        %v822 = vunpack.c.l.s4 839922192
        %v823 = vunpack.c.0.s8 %v822
        %v824 = vlaneseq
        %v825 = vshrl.u32 %v824, 7
        %v826 = vsub.s32 %v823, %v825
        %v827 = vrot.slane %v820, %v826
        %v829 = vmul.f32 %v282, %v827
        %v830 = vmul.f32 %v283, %v827
        %833 = vrot.lane.b32.xlu0 %v829, 80
        %v834 = vpop.permute.xlu0 %833
        %835 = vrot.lane.b32.xlu0 %v830, 80
        %v836 = vpop.permute.xlu0 %835
        %v837 = vrot.slane %v834, 4
        %v838 = vrot.slane %v836, 4
        %v839 = vsel %vm347, %v837, %v838
        %v840 = vsel %vm405, %v834, %v839
        %v843 = vadd.f32 %v816, %v840
        %v844 = vadd.f32 %v817, %v836
        %845 = vset.pattern.permute.xlu0 30
        %846 = vperm.xlu0 %845, %v311
        %v847 = vpop.permute.xlu0 %846
        %848 = vrot.lane.b32.xlu0 %v282, 113
        %v849 = vpop.permute.xlu0 %848
        %850 = vrot.lane.b32.xlu0 %v283, 113
        %v851 = vpop.permute.xlu0 %850
        %v852 = vrot.slane %v849, 4
        %v853 = vrot.slane %v851, 4
        %v854 = vsel %vm347, %v852, %v853
        %vm855 = vcmask 924672
        %v856 = vsel %vm855, %v854, %v851
        %v859 = vunpack.c.l.s4 839922192
        %v860 = vunpack.c.0.s8 %v859
        %v861 = vlaneseq
        %v862 = vshrl.u32 %v861, 7
        %v863 = vsub.s32 %v860, %v862
        %v864 = vrot.slane %v847, %v863
        %v866 = vmul.f32 %v856, %v864
        %868 = vrot.lane.b32.xlu0 %v866, 79
        %v869 = vpop.permute.xlu0 %868
        %v870 = vrot.slane %v869, 4
        %vm871 = vcmask 646144
        %v872 = vsel %vm871, %v870, %v869
        %v875 = vadd.f32 %v843, %v872
        %v876 = vadd.f32 %v844, %v870
        %877 = vset.pattern.permute.xlu0 37
        %878 = vperm.xlu0 %877, %v311
        %v879 = vpop.permute.xlu0 %878
        %880 = vrot.lane.b32.xlu0 %v282, 97
        %v881 = vpop.permute.xlu0 %880
        %882 = vrot.lane.b32.xlu0 %v283, 97
        %v883 = vpop.permute.xlu0 %882
        %v884 = vrot.slane %v881, 4
        %v885 = vrot.slane %v883, 4
        %v886 = vsel %vm347, %v884, %v885
        %vm887 = vcmask 793600
        %v888 = vsel %vm887, %v886, %v883
        %v891 = vunpack.c.l.s4 839922192
        %v892 = vunpack.c.0.s8 %v891
        %v893 = vlaneseq
        %v894 = vshrl.u32 %v893, 7
        %v895 = vsub.s32 %v892, %v894
        %v896 = vrot.slane %v879, %v895
        %v898 = vmul.f32 %v888, %v896
        %900 = vrot.lane.b32.xlu0 %v898, 79
        %v901 = vpop.permute.xlu0 %900
        %v902 = vrot.slane %v901, 4
        %v903 = vsel %vm871, %v902, %v901
        %v906 = vadd.f32 %v875, %v903
        %v907 = vadd.f32 %v876, %v902
        %908 = vset.pattern.permute.xlu0 44
        %909 = vperm.xlu0 %908, %v311
        %v910 = vpop.permute.xlu0 %909
        %911 = vrot.lane.b32.xlu0 %v282, 81
        %v912 = vpop.permute.xlu0 %911
        %913 = vrot.lane.b32.xlu0 %v283, 81
        %v914 = vpop.permute.xlu0 %913
        %v915 = vrot.slane %v912, 4
        %v916 = vrot.slane %v914, 4
        %v917 = vsel %vm347, %v915, %v916
        %vm918 = vcmask 662528
        %v919 = vsel %vm918, %v917, %v914
        %v922 = vunpack.c.l.s4 839922192
        %v923 = vunpack.c.0.s8 %v922
        %v924 = vlaneseq
        %v925 = vshrl.u32 %v924, 7
        %v926 = vsub.s32 %v923, %v925
        %v927 = vrot.slane %v910, %v926
        %v929 = vmul.f32 %v919, %v927
        %931 = vrot.lane.b32.xlu0 %v929, 79
        %v932 = vpop.permute.xlu0 %931
        %v933 = vrot.slane %v932, 4
        %v934 = vsel %vm871, %v933, %v932
        %v937 = vadd.f32 %v906, %v934
        %v938 = vadd.f32 %v907, %v933
        %v939 = vadd.s32 %v309, 4294967295
        %v940 = vadd.s32 %v310, 4294967295
        %vm941 = vcmp.ge.s32.totalorder %v939, 0
        %vm942 = vcmp.ge.s32.totalorder %v940, 0
        %vm943 = vcmp.lt.s32.totalorder %v939, 16
        %vm944 = vcmp.lt.s32.totalorder %v940, 16
        %vm945 = vmand %vm941, %vm943
        %vm946 = vmand %vm942, %vm944
        %v947 = vsel %vm945, 1, 0
        %v948 = vsel %vm946, 1, 0
        %vm949 = vcmp.eq.s32.totalorder %v947, 1
        %vm950 = vcmp.eq.s32.totalorder %v948, 1
        %v953 = vcombine.high %v937, %v937
        %954 = vrot.lane.b32.xlu0 %v937, 49
        %v955 = vpop.permute.xlu0 %954
        %956 = vrot.lane.b32.xlu0 %v953, 49
        %v957 = vpop.permute.xlu0 %956
        %958 = vrot.lane.b32.xlu0 %v938, 49
        %v959 = vpop.permute.xlu0 %958
        %vm960 = vcmask 400384
        %v961 = vsel %vm960, %v955, %v957
        %v962 = vsel %vm960, %v957, %v959
        %v965 = vsel %vm949, %v961, 0.0
        %v966 = vsel %vm950, %v962, 0.0
        %967 = vset.pattern.permute.xlu0 3
        %968 = vperm.xlu0 %967, %v311
        %v969 = vpop.permute.xlu0 %968
        %v971 = vunpack.c.l.s4 839922192
        %v972 = vunpack.c.0.s8 %v971
        %v973 = vlaneseq
        %v974 = vshrl.u32 %v973, 7
        %v975 = vsub.s32 %v972, %v974
        %v976 = vrot.slane %v969, %v975
        %v978 = vmul.f32 %v282, %v976
        %v979 = vmul.f32 %v283, %v976
        %980 = vset.pattern.permute.xlu0 10
        %981 = vperm.xlu0 %980, %v311
        %v982 = vpop.permute.xlu0 %981
        %v984 = vunpack.c.l.s4 839922192
        %v985 = vunpack.c.0.s8 %v984
        %v986 = vlaneseq
        %v987 = vshrl.u32 %v986, 7
        %v988 = vsub.s32 %v985, %v987
        %v989 = vrot.slane %v982, %v988
        %v991 = vmul.f32 %v282, %v989
        %v992 = vmul.f32 %v283, %v989
        %995 = vrot.lane.b32.xlu0 %v991, 112
        %v996 = vpop.permute.xlu0 %995
        %997 = vrot.lane.b32.xlu0 %v992, 112
        %v998 = vpop.permute.xlu0 %997
        %v999 = vrot.slane %v996, 4
        %v1000 = vrot.slane %v998, 4
        %v1001 = vsel %vm347, %v999, %v1000
        %v1002 = vsel %vm349, %v996, %v1001
        %v1005 = vadd.f32 %v978, %v1002
        %v1006 = vadd.f32 %v979, %v998
        %1007 = vset.pattern.permute.xlu0 17
        %1008 = vperm.xlu0 %1007, %v311
        %v1009 = vpop.permute.xlu0 %1008
        %v1011 = vunpack.c.l.s4 839922192
        %v1012 = vunpack.c.0.s8 %v1011
        %v1013 = vlaneseq
        %v1014 = vshrl.u32 %v1013, 7
        %v1015 = vsub.s32 %v1012, %v1014
        %v1016 = vrot.slane %v1009, %v1015
        %v1018 = vmul.f32 %v282, %v1016
        %v1019 = vmul.f32 %v283, %v1016
        %1022 = vrot.lane.b32.xlu0 %v1018, 96
        %v1023 = vpop.permute.xlu0 %1022
        %1024 = vrot.lane.b32.xlu0 %v1019, 96
        %v1025 = vpop.permute.xlu0 %1024
        %v1026 = vrot.slane %v1023, 4
        %v1027 = vrot.slane %v1025, 4
        %v1028 = vsel %vm347, %v1026, %v1027
        %v1029 = vsel %vm377, %v1023, %v1028
        %v1032 = vadd.f32 %v1005, %v1029
        %v1033 = vadd.f32 %v1006, %v1025
        %1034 = vset.pattern.permute.xlu0 24
        %1035 = vperm.xlu0 %1034, %v311
        %v1036 = vpop.permute.xlu0 %1035
        %v1037 = vrot.slane %v282, 4
        %v1038 = vrot.slane %v283, 4
        %v1039 = vsel %vm347, %v1037, %v1038
        %v1042 = vunpack.c.l.s4 839922192
        %v1043 = vunpack.c.0.s8 %v1042
        %v1044 = vlaneseq
        %v1045 = vshrl.u32 %v1044, 7
        %v1046 = vsub.s32 %v1043, %v1045
        %v1047 = vrot.slane %v1036, %v1046
        %v1049 = vmul.f32 %v1039, %v1047
        %1051 = vrot.lane.b32.xlu0 %v1049, 80
        %v1052 = vpop.permute.xlu0 %1051
        %v1053 = vrot.slane %v1052, 4
        %v1054 = vsel %vm405, %v1053, %v1052
        %v1057 = vadd.f32 %v1032, %v1054
        %v1058 = vadd.f32 %v1033, %v1053
        %1059 = vset.pattern.permute.xlu0 31
        %1060 = vperm.xlu0 %1059, %v311
        %v1061 = vpop.permute.xlu0 %1060
        %1062 = vrot.lane.b32.xlu0 %v282, 112
        %v1063 = vpop.permute.xlu0 %1062
        %1064 = vrot.lane.b32.xlu0 %v283, 112
        %v1065 = vpop.permute.xlu0 %1064
        %v1066 = vrot.slane %v1063, 4
        %v1067 = vrot.slane %v1065, 4
        %v1068 = vsel %vm347, %v1066, %v1067
        %v1069 = vsel %vm349, %v1068, %v1065
        %v1072 = vunpack.c.l.s4 839922192
        %v1073 = vunpack.c.0.s8 %v1072
        %v1074 = vlaneseq
        %v1075 = vshrl.u32 %v1074, 7
        %v1076 = vsub.s32 %v1073, %v1075
        %v1077 = vrot.slane %v1061, %v1076
        %v1079 = vmul.f32 %v1069, %v1077
        %1081 = vrot.lane.b32.xlu0 %v1079, 80
        %v1082 = vpop.permute.xlu0 %1081
        %v1083 = vrot.slane %v1082, 4
        %v1084 = vsel %vm405, %v1083, %v1082
        %v1087 = vadd.f32 %v1057, %v1084
        %v1088 = vadd.f32 %v1058, %v1083
        %1089 = vset.pattern.permute.xlu0 38
        %1090 = vperm.xlu0 %1089, %v311
        %v1091 = vpop.permute.xlu0 %1090
        %1092 = vrot.lane.b32.xlu0 %v282, 96
        %v1093 = vpop.permute.xlu0 %1092
        %1094 = vrot.lane.b32.xlu0 %v283, 96
        %v1095 = vpop.permute.xlu0 %1094
        %v1096 = vrot.slane %v1093, 4
        %v1097 = vrot.slane %v1095, 4
        %v1098 = vsel %vm347, %v1096, %v1097
        %v1099 = vsel %vm377, %v1098, %v1095
        %v1102 = vunpack.c.l.s4 839922192
        %v1103 = vunpack.c.0.s8 %v1102
        %v1104 = vlaneseq
        %v1105 = vshrl.u32 %v1104, 7
        %v1106 = vsub.s32 %v1103, %v1105
        %v1107 = vrot.slane %v1091, %v1106
        %v1109 = vmul.f32 %v1099, %v1107
        %1111 = vrot.lane.b32.xlu0 %v1109, 80
        %v1112 = vpop.permute.xlu0 %1111
        %v1113 = vrot.slane %v1112, 4
        %v1114 = vsel %vm405, %v1113, %v1112
        %v1117 = vadd.f32 %v1087, %v1114
        %v1118 = vadd.f32 %v1088, %v1113
        %1119 = vset.pattern.permute.xlu0 45
        %1120 = vperm.xlu0 %1119, %v311
        %v1121 = vpop.permute.xlu0 %1120
        %1122 = vrot.lane.b32.xlu0 %v282, 80
        %v1123 = vpop.permute.xlu0 %1122
        %1124 = vrot.lane.b32.xlu0 %v283, 80
        %v1125 = vpop.permute.xlu0 %1124
        %v1126 = vrot.slane %v1123, 4
        %v1127 = vrot.slane %v1125, 4
        %v1128 = vsel %vm347, %v1126, %v1127
        %v1129 = vsel %vm405, %v1128, %v1125
        %v1132 = vunpack.c.l.s4 839922192
        %v1133 = vunpack.c.0.s8 %v1132
        %v1134 = vlaneseq
        %v1135 = vshrl.u32 %v1134, 7
        %v1136 = vsub.s32 %v1133, %v1135
        %v1137 = vrot.slane %v1121, %v1136
        %v1139 = vmul.f32 %v1129, %v1137
        %1141 = vrot.lane.b32.xlu0 %v1139, 80
        %v1142 = vpop.permute.xlu0 %1141
        %v1143 = vrot.slane %v1142, 4
        %v1144 = vsel %vm405, %v1143, %v1142
        %v1147 = vadd.f32 %v1117, %v1144
        %v1148 = vadd.f32 %v1118, %v1143
        %vm1149 = vcmp.ge.s32.totalorder %v309, 0
        %vm1150 = vcmp.ge.s32.totalorder %v310, 0
        %vm1151 = vcmp.lt.s32.totalorder %v309, 16
        %vm1152 = vcmp.lt.s32.totalorder %v310, 16
        %vm1153 = vmand %vm1149, %vm1151
        %vm1154 = vmand %vm1150, %vm1152
        %v1155 = vsel %vm1153, 1, 0
        %v1156 = vsel %vm1154, 1, 0
        %vm1157 = vcmp.eq.s32.totalorder %v1155, 1
        %vm1158 = vcmp.eq.s32.totalorder %v1156, 1
        %v1161 = vcombine.high %v1147, %v1147
        %1162 = vrot.lane.b32.xlu0 %v1147, 48
        %v1163 = vpop.permute.xlu0 %1162
        %1164 = vrot.lane.b32.xlu0 %v1161, 48
        %v1165 = vpop.permute.xlu0 %1164
        %1166 = vrot.lane.b32.xlu0 %v1148, 48
        %v1167 = vpop.permute.xlu0 %1166
        %vm1168 = vcmask 392192
        %v1169 = vsel %vm1168, %v1163, %v1165
        %v1170 = vsel %vm1168, %v1165, %v1167
        %v1173 = vsel %vm1157, %v1169, 0.0
        %v1174 = vsel %vm1158, %v1170, 0.0
        %1175 = vset.pattern.permute.xlu0 4
        %1176 = vperm.xlu0 %1175, %v311
        %v1177 = vpop.permute.xlu0 %1176
        %v1179 = vunpack.c.l.s4 839922192
        %v1180 = vunpack.c.0.s8 %v1179
        %v1181 = vlaneseq
        %v1182 = vshrl.u32 %v1181, 7
        %v1183 = vsub.s32 %v1180, %v1182
        %v1184 = vrot.slane %v1177, %v1183
        %v1186 = vmul.f32 %v282, %v1184
        %v1187 = vmul.f32 %v283, %v1184
        %1188 = vset.pattern.permute.xlu0 11
        %1189 = vperm.xlu0 %1188, %v311
        %v1190 = vpop.permute.xlu0 %1189
        %v1192 = vunpack.c.l.s4 839922192
        %v1193 = vunpack.c.0.s8 %v1192
        %v1194 = vlaneseq
        %v1195 = vshrl.u32 %v1194, 7
        %v1196 = vsub.s32 %v1193, %v1195
        %v1197 = vrot.slane %v1190, %v1196
        %v1199 = vmul.f32 %v282, %v1197
        %v1200 = vmul.f32 %v283, %v1197
        %1203 = vrot.lane.b32.xlu0 %v1199, 112
        %v1204 = vpop.permute.xlu0 %1203
        %1205 = vrot.lane.b32.xlu0 %v1200, 112
        %v1206 = vpop.permute.xlu0 %1205
        %v1207 = vrot.slane %v1204, 4
        %v1208 = vrot.slane %v1206, 4
        %v1209 = vsel %vm347, %v1207, %v1208
        %v1210 = vsel %vm349, %v1204, %v1209
        %v1213 = vadd.f32 %v1186, %v1210
        %v1214 = vadd.f32 %v1187, %v1206
        %1215 = vset.pattern.permute.xlu0 18
        %1216 = vperm.xlu0 %1215, %v311
        %v1217 = vpop.permute.xlu0 %1216
        %v1219 = vunpack.c.l.s4 839922192
        %v1220 = vunpack.c.0.s8 %v1219
        %v1221 = vlaneseq
        %v1222 = vshrl.u32 %v1221, 7
        %v1223 = vsub.s32 %v1220, %v1222
        %v1224 = vrot.slane %v1217, %v1223
        %v1226 = vmul.f32 %v282, %v1224
        %v1227 = vmul.f32 %v283, %v1224
        %1230 = vrot.lane.b32.xlu0 %v1226, 96
        %v1231 = vpop.permute.xlu0 %1230
        %1232 = vrot.lane.b32.xlu0 %v1227, 96
        %v1233 = vpop.permute.xlu0 %1232
        %v1234 = vrot.slane %v1231, 4
        %v1235 = vrot.slane %v1233, 4
        %v1236 = vsel %vm347, %v1234, %v1235
        %v1237 = vsel %vm377, %v1231, %v1236
        %v1240 = vadd.f32 %v1213, %v1237
        %v1241 = vadd.f32 %v1214, %v1233
        %1242 = vset.pattern.permute.xlu0 25
        %1243 = vperm.xlu0 %1242, %v311
        %v1244 = vpop.permute.xlu0 %1243
        %1245 = vrot.lane.b32.xlu0 %v282, 127
        %v1246 = vpop.permute.xlu0 %1245
        %1247 = vrot.lane.b32.xlu0 %v283, 127
        %v1248 = vpop.permute.xlu0 %1247
        %v1249 = vrot.slane %v1246, 4
        %v1250 = vrot.slane %v1248, 4
        %v1251 = vsel %vm347, %v1249, %v1250
        %vm1252 = vcmask 1039360
        %v1253 = vsel %vm1252, %v1251, %v1248
        %v1256 = vunpack.c.l.s4 839922192
        %v1257 = vunpack.c.0.s8 %v1256
        %v1258 = vlaneseq
        %v1259 = vshrl.u32 %v1258, 7
        %v1260 = vsub.s32 %v1257, %v1259
        %v1261 = vrot.slane %v1244, %v1260
        %v1263 = vmul.f32 %v1253, %v1261
        %1265 = vrot.lane.b32.xlu0 %v1263, 81
        %v1266 = vpop.permute.xlu0 %1265
        %v1267 = vrot.slane %v1266, 4
        %v1268 = vsel %vm918, %v1267, %v1266
        %v1271 = vadd.f32 %v1240, %v1268
        %v1272 = vadd.f32 %v1241, %v1267
        %1273 = vset.pattern.permute.xlu0 32
        %1274 = vperm.xlu0 %1273, %v311
        %v1275 = vpop.permute.xlu0 %1274
        %1276 = vrot.lane.b32.xlu0 %v282, 111
        %v1277 = vpop.permute.xlu0 %1276
        %1278 = vrot.lane.b32.xlu0 %v283, 111
        %v1279 = vpop.permute.xlu0 %1278
        %v1280 = vrot.slane %v1277, 4
        %v1281 = vrot.slane %v1279, 4
        %v1282 = vsel %vm347, %v1280, %v1281
        %vm1283 = vcmask 908288
        %v1284 = vsel %vm1283, %v1282, %v1279
        %v1287 = vunpack.c.l.s4 839922192
        %v1288 = vunpack.c.0.s8 %v1287
        %v1289 = vlaneseq
        %v1290 = vshrl.u32 %v1289, 7
        %v1291 = vsub.s32 %v1288, %v1290
        %v1292 = vrot.slane %v1275, %v1291
        %v1294 = vmul.f32 %v1284, %v1292
        %1296 = vrot.lane.b32.xlu0 %v1294, 81
        %v1297 = vpop.permute.xlu0 %1296
        %v1298 = vrot.slane %v1297, 4
        %v1299 = vsel %vm918, %v1298, %v1297
        %v1302 = vadd.f32 %v1271, %v1299
        %v1303 = vadd.f32 %v1272, %v1298
        %1304 = vset.pattern.permute.xlu0 39
        %1305 = vperm.xlu0 %1304, %v311
        %v1306 = vpop.permute.xlu0 %1305
        %1307 = vrot.lane.b32.xlu0 %v282, 95
        %v1308 = vpop.permute.xlu0 %1307
        %1309 = vrot.lane.b32.xlu0 %v283, 95
        %v1310 = vpop.permute.xlu0 %1309
        %v1311 = vrot.slane %v1308, 4
        %v1312 = vrot.slane %v1310, 4
        %v1313 = vsel %vm347, %v1311, %v1312
        %vm1314 = vcmask 777216
        %v1315 = vsel %vm1314, %v1313, %v1310
        %v1318 = vunpack.c.l.s4 839922192
        %v1319 = vunpack.c.0.s8 %v1318
        %v1320 = vlaneseq
        %v1321 = vshrl.u32 %v1320, 7
        %v1322 = vsub.s32 %v1319, %v1321
        %v1323 = vrot.slane %v1306, %v1322
        %v1325 = vmul.f32 %v1315, %v1323
        %1327 = vrot.lane.b32.xlu0 %v1325, 81
        %v1328 = vpop.permute.xlu0 %1327
        %v1329 = vrot.slane %v1328, 4
        %v1330 = vsel %vm918, %v1329, %v1328
        %v1333 = vadd.f32 %v1302, %v1330
        %v1334 = vadd.f32 %v1303, %v1329
        %1335 = vset.pattern.permute.xlu0 46
        %1336 = vperm.xlu0 %1335, %v311
        %v1337 = vpop.permute.xlu0 %1336
        %1338 = vrot.lane.b32.xlu0 %v282, 79
        %v1339 = vpop.permute.xlu0 %1338
        %1340 = vrot.lane.b32.xlu0 %v283, 79
        %v1341 = vpop.permute.xlu0 %1340
        %v1342 = vrot.slane %v1339, 4
        %v1343 = vrot.slane %v1341, 4
        %v1344 = vsel %vm347, %v1342, %v1343
        %v1345 = vsel %vm871, %v1344, %v1341
        %v1348 = vunpack.c.l.s4 839922192
        %v1349 = vunpack.c.0.s8 %v1348
        %v1350 = vlaneseq
        %v1351 = vshrl.u32 %v1350, 7
        %v1352 = vsub.s32 %v1349, %v1351
        %v1353 = vrot.slane %v1337, %v1352
        %v1355 = vmul.f32 %v1345, %v1353
        %1357 = vrot.lane.b32.xlu0 %v1355, 81
        %v1358 = vpop.permute.xlu0 %1357
        %v1359 = vrot.slane %v1358, 4
        %v1360 = vsel %vm918, %v1359, %v1358
        %v1363 = vadd.f32 %v1333, %v1360
        %v1364 = vadd.f32 %v1334, %v1359
        %v1365 = vadd.s32 %v309, 1
        %v1366 = vadd.s32 %v310, 1
        %vm1367 = vcmp.ge.s32.totalorder %v1365, 0
        %vm1368 = vcmp.ge.s32.totalorder %v1366, 0
        %vm1369 = vcmp.lt.s32.totalorder %v1365, 16
        %vm1370 = vcmp.lt.s32.totalorder %v1366, 16
        %vm1371 = vmand %vm1367, %vm1369
        %vm1372 = vmand %vm1368, %vm1370
        %v1373 = vsel %vm1371, 1, 0
        %v1374 = vsel %vm1372, 1, 0
        %vm1375 = vcmp.eq.s32.totalorder %v1373, 1
        %vm1376 = vcmp.eq.s32.totalorder %v1374, 1
        %v1379 = vcombine.high %v1363, %v1363
        %1380 = vrot.lane.b32.xlu0 %v1363, 47
        %v1381 = vpop.permute.xlu0 %1380
        %1382 = vrot.lane.b32.xlu0 %v1379, 47
        %v1383 = vpop.permute.xlu0 %1382
        %1384 = vrot.lane.b32.xlu0 %v1364, 47
        %v1385 = vpop.permute.xlu0 %1384
        %vm1386 = vcmask 384000
        %v1387 = vsel %vm1386, %v1381, %v1383
        %v1388 = vsel %vm1386, %v1383, %v1385
        %v1391 = vsel %vm1375, %v1387, 0.0
        %v1392 = vsel %vm1376, %v1388, 0.0
        %1393 = vset.pattern.permute.xlu0 5
        %1394 = vperm.xlu0 %1393, %v311
        %v1395 = vpop.permute.xlu0 %1394
        %v1397 = vunpack.c.l.s4 839922192
        %v1398 = vunpack.c.0.s8 %v1397
        %v1399 = vlaneseq
        %v1400 = vshrl.u32 %v1399, 7
        %v1401 = vsub.s32 %v1398, %v1400
        %v1402 = vrot.slane %v1395, %v1401
        %v1404 = vmul.f32 %v282, %v1402
        %v1405 = vmul.f32 %v283, %v1402
        %1406 = vset.pattern.permute.xlu0 12
        %1407 = vperm.xlu0 %1406, %v311
        %v1408 = vpop.permute.xlu0 %1407
        %v1410 = vunpack.c.l.s4 839922192
        %v1411 = vunpack.c.0.s8 %v1410
        %v1412 = vlaneseq
        %v1413 = vshrl.u32 %v1412, 7
        %v1414 = vsub.s32 %v1411, %v1413
        %v1415 = vrot.slane %v1408, %v1414
        %v1417 = vmul.f32 %v282, %v1415
        %v1418 = vmul.f32 %v283, %v1415
        %1421 = vrot.lane.b32.xlu0 %v1417, 112
        %v1422 = vpop.permute.xlu0 %1421
        %1423 = vrot.lane.b32.xlu0 %v1418, 112
        %v1424 = vpop.permute.xlu0 %1423
        %v1425 = vrot.slane %v1422, 4
        %v1426 = vrot.slane %v1424, 4
        %v1427 = vsel %vm347, %v1425, %v1426
        %v1428 = vsel %vm349, %v1422, %v1427
        %v1431 = vadd.f32 %v1404, %v1428
        %v1432 = vadd.f32 %v1405, %v1424
        %1433 = vset.pattern.permute.xlu0 19
        %1434 = vperm.xlu0 %1433, %v311
        %v1435 = vpop.permute.xlu0 %1434
        %v1437 = vunpack.c.l.s4 839922192
        %v1438 = vunpack.c.0.s8 %v1437
        %v1439 = vlaneseq
        %v1440 = vshrl.u32 %v1439, 7
        %v1441 = vsub.s32 %v1438, %v1440
        %v1442 = vrot.slane %v1435, %v1441
        %v1444 = vmul.f32 %v282, %v1442
        %v1445 = vmul.f32 %v283, %v1442
        %1448 = vrot.lane.b32.xlu0 %v1444, 96
        %v1449 = vpop.permute.xlu0 %1448
        %1450 = vrot.lane.b32.xlu0 %v1445, 96
        %v1451 = vpop.permute.xlu0 %1450
        %v1452 = vrot.slane %v1449, 4
        %v1453 = vrot.slane %v1451, 4
        %v1454 = vsel %vm347, %v1452, %v1453
        %v1455 = vsel %vm377, %v1449, %v1454
        %v1458 = vadd.f32 %v1431, %v1455
        %v1459 = vadd.f32 %v1432, %v1451
        %1460 = vset.pattern.permute.xlu0 26
        %1461 = vperm.xlu0 %1460, %v311
        %v1462 = vpop.permute.xlu0 %1461
        %1463 = vrot.lane.b32.xlu0 %v282, 126
        %v1464 = vpop.permute.xlu0 %1463
        %1465 = vrot.lane.b32.xlu0 %v283, 126
        %v1466 = vpop.permute.xlu0 %1465
        %v1467 = vrot.slane %v1464, 4
        %v1468 = vrot.slane %v1466, 4
        %v1469 = vsel %vm347, %v1467, %v1468
        %vm1470 = vcmask 1031168
        %v1471 = vsel %vm1470, %v1469, %v1466
        %v1474 = vunpack.c.l.s4 839922192
        %v1475 = vunpack.c.0.s8 %v1474
        %v1476 = vlaneseq
        %v1477 = vshrl.u32 %v1476, 7
        %v1478 = vsub.s32 %v1475, %v1477
        %v1479 = vrot.slane %v1462, %v1478
        %v1481 = vmul.f32 %v1471, %v1479
        %1483 = vrot.lane.b32.xlu0 %v1481, 82
        %v1484 = vpop.permute.xlu0 %1483
        %v1485 = vrot.slane %v1484, 4
        %v1486 = vsel %vm702, %v1485, %v1484
        %v1489 = vadd.f32 %v1458, %v1486
        %v1490 = vadd.f32 %v1459, %v1485
        %1491 = vset.pattern.permute.xlu0 33
        %1492 = vperm.xlu0 %1491, %v311
        %v1493 = vpop.permute.xlu0 %1492
        %1494 = vrot.lane.b32.xlu0 %v282, 110
        %v1495 = vpop.permute.xlu0 %1494
        %1496 = vrot.lane.b32.xlu0 %v283, 110
        %v1497 = vpop.permute.xlu0 %1496
        %v1498 = vrot.slane %v1495, 4
        %v1499 = vrot.slane %v1497, 4
        %v1500 = vsel %vm347, %v1498, %v1499
        %vm1501 = vcmask 900096
        %v1502 = vsel %vm1501, %v1500, %v1497
        %v1505 = vunpack.c.l.s4 839922192
        %v1506 = vunpack.c.0.s8 %v1505
        %v1507 = vlaneseq
        %v1508 = vshrl.u32 %v1507, 7
        %v1509 = vsub.s32 %v1506, %v1508
        %v1510 = vrot.slane %v1493, %v1509
        %v1512 = vmul.f32 %v1502, %v1510
        %1514 = vrot.lane.b32.xlu0 %v1512, 82
        %v1515 = vpop.permute.xlu0 %1514
        %v1516 = vrot.slane %v1515, 4
        %v1517 = vsel %vm702, %v1516, %v1515
        %v1520 = vadd.f32 %v1489, %v1517
        %v1521 = vadd.f32 %v1490, %v1516
        %1522 = vset.pattern.permute.xlu0 40
        %1523 = vperm.xlu0 %1522, %v311
        %v1524 = vpop.permute.xlu0 %1523
        %1525 = vrot.lane.b32.xlu0 %v282, 94
        %v1526 = vpop.permute.xlu0 %1525
        %1527 = vrot.lane.b32.xlu0 %v283, 94
        %v1528 = vpop.permute.xlu0 %1527
        %v1529 = vrot.slane %v1526, 4
        %v1530 = vrot.slane %v1528, 4
        %v1531 = vsel %vm347, %v1529, %v1530
        %vm1532 = vcmask 769024
        %v1533 = vsel %vm1532, %v1531, %v1528
        %v1536 = vunpack.c.l.s4 839922192
        %v1537 = vunpack.c.0.s8 %v1536
        %v1538 = vlaneseq
        %v1539 = vshrl.u32 %v1538, 7
        %v1540 = vsub.s32 %v1537, %v1539
        %v1541 = vrot.slane %v1524, %v1540
        %v1543 = vmul.f32 %v1533, %v1541
        %1545 = vrot.lane.b32.xlu0 %v1543, 82
        %v1546 = vpop.permute.xlu0 %1545
        %v1547 = vrot.slane %v1546, 4
        %v1548 = vsel %vm702, %v1547, %v1546
        %v1551 = vadd.f32 %v1520, %v1548
        %v1552 = vadd.f32 %v1521, %v1547
        %1553 = vset.pattern.permute.xlu0 47
        %1554 = vperm.xlu0 %1553, %v311
        %v1555 = vpop.permute.xlu0 %1554
        %1556 = vrot.lane.b32.xlu0 %v282, 78
        %v1557 = vpop.permute.xlu0 %1556
        %1558 = vrot.lane.b32.xlu0 %v283, 78
        %v1559 = vpop.permute.xlu0 %1558
        %v1560 = vrot.slane %v1557, 4
        %v1561 = vrot.slane %v1559, 4
        %v1562 = vsel %vm347, %v1560, %v1561
        %v1563 = vsel %vm655, %v1562, %v1559
        %v1566 = vunpack.c.l.s4 839922192
        %v1567 = vunpack.c.0.s8 %v1566
        %v1568 = vlaneseq
        %v1569 = vshrl.u32 %v1568, 7
        %v1570 = vsub.s32 %v1567, %v1569
        %v1571 = vrot.slane %v1555, %v1570
        %v1573 = vmul.f32 %v1563, %v1571
        %1575 = vrot.lane.b32.xlu0 %v1573, 82
        %v1576 = vpop.permute.xlu0 %1575
        %v1577 = vrot.slane %v1576, 4
        %v1578 = vsel %vm702, %v1577, %v1576
        %v1581 = vadd.f32 %v1551, %v1578
        %v1582 = vadd.f32 %v1552, %v1577
        %v1583 = vadd.s32 %v309, 2
        %v1584 = vadd.s32 %v310, 2
        %vm1585 = vcmp.ge.s32.totalorder %v1583, 0
        %vm1586 = vcmp.ge.s32.totalorder %v1584, 0
        %vm1587 = vcmp.lt.s32.totalorder %v1583, 16
        %vm1588 = vcmp.lt.s32.totalorder %v1584, 16
        %vm1589 = vmand %vm1585, %vm1587
        %vm1590 = vmand %vm1586, %vm1588
        %v1591 = vsel %vm1589, 1, 0
        %v1592 = vsel %vm1590, 1, 0
        %vm1593 = vcmp.eq.s32.totalorder %v1591, 1
        %vm1594 = vcmp.eq.s32.totalorder %v1592, 1
        %v1597 = vcombine.high %v1581, %v1581
        %1598 = vrot.lane.b32.xlu0 %v1581, 46
        %v1599 = vpop.permute.xlu0 %1598
        %1600 = vrot.lane.b32.xlu0 %v1597, 46
        %v1601 = vpop.permute.xlu0 %1600
        %1602 = vrot.lane.b32.xlu0 %v1582, 46
        %v1603 = vpop.permute.xlu0 %1602
        %vm1604 = vcmask 375808
        %v1605 = vsel %vm1604, %v1599, %v1601
        %v1606 = vsel %vm1604, %v1601, %v1603
        %v1609 = vsel %vm1593, %v1605, 0.0
        %v1610 = vsel %vm1594, %v1606, 0.0
        %1611 = vset.pattern.permute.xlu0 6
        %1612 = vperm.xlu0 %1611, %v311
        %v1613 = vpop.permute.xlu0 %1612
        %v1615 = vunpack.c.l.s4 839922192
        %v1616 = vunpack.c.0.s8 %v1615
        %v1617 = vlaneseq
        %v1618 = vshrl.u32 %v1617, 7
        %v1619 = vsub.s32 %v1616, %v1618
        %v1620 = vrot.slane %v1613, %v1619
        %v1622 = vmul.f32 %v282, %v1620
        %v1623 = vmul.f32 %v283, %v1620
        %1624 = vset.pattern.permute.xlu0 13
        %1625 = vperm.xlu0 %1624, %v311
        %v1626 = vpop.permute.xlu0 %1625
        %v1628 = vunpack.c.l.s4 839922192
        %v1629 = vunpack.c.0.s8 %v1628
        %v1630 = vlaneseq
        %v1631 = vshrl.u32 %v1630, 7
        %v1632 = vsub.s32 %v1629, %v1631
        %v1633 = vrot.slane %v1626, %v1632
        %v1635 = vmul.f32 %v282, %v1633
        %v1636 = vmul.f32 %v283, %v1633
        %1639 = vrot.lane.b32.xlu0 %v1635, 112
        %v1640 = vpop.permute.xlu0 %1639
        %1641 = vrot.lane.b32.xlu0 %v1636, 112
        %v1642 = vpop.permute.xlu0 %1641
        %v1643 = vrot.slane %v1640, 4
        %v1644 = vrot.slane %v1642, 4
        %v1645 = vsel %vm347, %v1643, %v1644
        %v1646 = vsel %vm349, %v1640, %v1645
        %v1649 = vadd.f32 %v1622, %v1646
        %v1650 = vadd.f32 %v1623, %v1642
        %1651 = vset.pattern.permute.xlu0 20
        %1652 = vperm.xlu0 %1651, %v311
        %v1653 = vpop.permute.xlu0 %1652
        %v1655 = vunpack.c.l.s4 839922192
        %v1656 = vunpack.c.0.s8 %v1655
        %v1657 = vlaneseq
        %v1658 = vshrl.u32 %v1657, 7
        %v1659 = vsub.s32 %v1656, %v1658
        %v1660 = vrot.slane %v1653, %v1659
        %v1662 = vmul.f32 %v282, %v1660
        %v1663 = vmul.f32 %v283, %v1660
        %1666 = vrot.lane.b32.xlu0 %v1662, 96
        %v1667 = vpop.permute.xlu0 %1666
        %1668 = vrot.lane.b32.xlu0 %v1663, 96
        %v1669 = vpop.permute.xlu0 %1668
        %v1670 = vrot.slane %v1667, 4
        %v1671 = vrot.slane %v1669, 4
        %v1672 = vsel %vm347, %v1670, %v1671
        %v1673 = vsel %vm377, %v1667, %v1672
        %v1676 = vadd.f32 %v1649, %v1673
        %v1677 = vadd.f32 %v1650, %v1669
        %1678 = vset.pattern.permute.xlu0 27
        %1679 = vperm.xlu0 %1678, %v311
        %v1680 = vpop.permute.xlu0 %1679
        %1681 = vrot.lane.b32.xlu0 %v282, 125
        %v1682 = vpop.permute.xlu0 %1681
        %1683 = vrot.lane.b32.xlu0 %v283, 125
        %v1684 = vpop.permute.xlu0 %1683
        %v1685 = vrot.slane %v1682, 4
        %v1686 = vrot.slane %v1684, 4
        %v1687 = vsel %vm347, %v1685, %v1686
        %vm1688 = vcmask 1022976
        %v1689 = vsel %vm1688, %v1687, %v1684
        %v1692 = vunpack.c.l.s4 839922192
        %v1693 = vunpack.c.0.s8 %v1692
        %v1694 = vlaneseq
        %v1695 = vshrl.u32 %v1694, 7
        %v1696 = vsub.s32 %v1693, %v1695
        %v1697 = vrot.slane %v1680, %v1696
        %v1699 = vmul.f32 %v1689, %v1697
        %1701 = vrot.lane.b32.xlu0 %v1699, 83
        %v1702 = vpop.permute.xlu0 %1701
        %v1703 = vrot.slane %v1702, 4
        %v1704 = vsel %vm486, %v1703, %v1702
        %v1707 = vadd.f32 %v1676, %v1704
        %v1708 = vadd.f32 %v1677, %v1703
        %1709 = vset.pattern.permute.xlu0 34
        %1710 = vperm.xlu0 %1709, %v311
        %v1711 = vpop.permute.xlu0 %1710
        %1712 = vrot.lane.b32.xlu0 %v282, 109
        %v1713 = vpop.permute.xlu0 %1712
        %1714 = vrot.lane.b32.xlu0 %v283, 109
        %v1715 = vpop.permute.xlu0 %1714
        %v1716 = vrot.slane %v1713, 4
        %v1717 = vrot.slane %v1715, 4
        %v1718 = vsel %vm347, %v1716, %v1717
        %vm1719 = vcmask 891904
        %v1720 = vsel %vm1719, %v1718, %v1715
        %v1723 = vunpack.c.l.s4 839922192
        %v1724 = vunpack.c.0.s8 %v1723
        %v1725 = vlaneseq
        %v1726 = vshrl.u32 %v1725, 7
        %v1727 = vsub.s32 %v1724, %v1726
        %v1728 = vrot.slane %v1711, %v1727
        %v1730 = vmul.f32 %v1720, %v1728
        %1732 = vrot.lane.b32.xlu0 %v1730, 83
        %v1733 = vpop.permute.xlu0 %1732
        %v1734 = vrot.slane %v1733, 4
        %v1735 = vsel %vm486, %v1734, %v1733
        %v1738 = vadd.f32 %v1707, %v1735
        %v1739 = vadd.f32 %v1708, %v1734
        %1740 = vset.pattern.permute.xlu0 41
        %1741 = vperm.xlu0 %1740, %v311
        %v1742 = vpop.permute.xlu0 %1741
        %1743 = vrot.lane.b32.xlu0 %v282, 93
        %v1744 = vpop.permute.xlu0 %1743
        %1745 = vrot.lane.b32.xlu0 %v283, 93
        %v1746 = vpop.permute.xlu0 %1745
        %v1747 = vrot.slane %v1744, 4
        %v1748 = vrot.slane %v1746, 4
        %v1749 = vsel %vm347, %v1747, %v1748
        %vm1750 = vcmask 760832
        %v1751 = vsel %vm1750, %v1749, %v1746
        %v1754 = vunpack.c.l.s4 839922192
        %v1755 = vunpack.c.0.s8 %v1754
        %v1756 = vlaneseq
        %v1757 = vshrl.u32 %v1756, 7
        %v1758 = vsub.s32 %v1755, %v1757
        %v1759 = vrot.slane %v1742, %v1758
        %v1761 = vmul.f32 %v1751, %v1759
        %1763 = vrot.lane.b32.xlu0 %v1761, 83
        %v1764 = vpop.permute.xlu0 %1763
        %v1765 = vrot.slane %v1764, 4
        %v1766 = vsel %vm486, %v1765, %v1764
        %v1769 = vadd.f32 %v1738, %v1766
        %v1770 = vadd.f32 %v1739, %v1765
        %1771 = vset.pattern.permute.xlu0 48
        %1772 = vperm.xlu0 %1771, %v311
        %v1773 = vpop.permute.xlu0 %1772
        %1774 = vrot.lane.b32.xlu0 %v282, 77
        %v1775 = vpop.permute.xlu0 %1774
        %1776 = vrot.lane.b32.xlu0 %v283, 77
        %v1777 = vpop.permute.xlu0 %1776
        %v1778 = vrot.slane %v1775, 4
        %v1779 = vrot.slane %v1777, 4
        %v1780 = vsel %vm347, %v1778, %v1779
        %v1781 = vsel %vm439, %v1780, %v1777
        %v1784 = vunpack.c.l.s4 839922192
        %v1785 = vunpack.c.0.s8 %v1784
        %v1786 = vlaneseq
        %v1787 = vshrl.u32 %v1786, 7
        %v1788 = vsub.s32 %v1785, %v1787
        %v1789 = vrot.slane %v1773, %v1788
        %v1791 = vmul.f32 %v1781, %v1789
        %1793 = vrot.lane.b32.xlu0 %v1791, 83
        %v1794 = vpop.permute.xlu0 %1793
        %v1795 = vrot.slane %v1794, 4
        %v1796 = vsel %vm486, %v1795, %v1794
        %v1799 = vadd.f32 %v1769, %v1796
        %v1800 = vadd.f32 %v1770, %v1795
        %v1801 = vadd.s32 %v309, 3
        %v1802 = vadd.s32 %v310, 3
        %vm1803 = vcmp.ge.s32.totalorder %v1801, 0
        %vm1804 = vcmp.ge.s32.totalorder %v1802, 0
        %vm1805 = vcmp.lt.s32.totalorder %v1801, 16
        %vm1806 = vcmp.lt.s32.totalorder %v1802, 16
        %vm1807 = vmand %vm1803, %vm1805
        %vm1808 = vmand %vm1804, %vm1806
        %v1809 = vsel %vm1807, 1, 0
        %v1810 = vsel %vm1808, 1, 0
        %vm1811 = vcmp.eq.s32.totalorder %v1809, 1
        %vm1812 = vcmp.eq.s32.totalorder %v1810, 1
        %v1815 = vcombine.high %v1799, %v1799
        %1816 = vrot.lane.b32.xlu0 %v1799, 45
        %v1817 = vpop.permute.xlu0 %1816
        %1818 = vrot.lane.b32.xlu0 %v1815, 45
        %v1819 = vpop.permute.xlu0 %1818
        %1820 = vrot.lane.b32.xlu0 %v1800, 45
        %v1821 = vpop.permute.xlu0 %1820
        %vm1822 = vcmask 367616
        %v1823 = vsel %vm1822, %v1817, %v1819
        %v1824 = vsel %vm1822, %v1819, %v1821
        %v1827 = vsel %vm1811, %v1823, 0.0
        %v1828 = vsel %vm1812, %v1824, 0.0
        %v1829 = vadd.f32 %v533, %v749
        %v1830 = vadd.f32 %v534, %v750
        %v1831 = vadd.f32 %v965, %v1173
        %v1832 = vadd.f32 %v966, %v1174
        %v1833 = vadd.f32 %v1391, %v1609
        %v1834 = vadd.f32 %v1392, %v1610
        %v1835 = vadd.f32 %v1829, %v1831
        %v1836 = vadd.f32 %v1830, %v1832
        %v1837 = vadd.f32 %v1833, %v1827
        %v1838 = vadd.f32 %v1834, %v1828
        %v1839 = vadd.f32 %v1835, %v1837
        %v1840 = vadd.f32 %v1836, %v1838
        %v1841 = vld [vmem:[%s2] sm:$0xf]
        %1843 = vset.pattern.permute.xlu0 0
        %1844 = vperm.xlu0 %1843, %v1841
        %v1845 = vpop.permute.xlu0 %1844
        %v1847 = vadd.f32 %v1839, %v1845
        %v1848 = vadd.f32 %v1840, %v1845
        %v1849 = vsel %vm347, %v1847, 0.0
        %v1850 = vrot.slane %v1849, 4
        %v1851 = vadd.f32 %v1849, %v1850
        %v1852 = vrot.slane %v1851, 2
        %v1853 = vadd.f32 %v1851, %v1852
        %v1854 = vrot.slane %v1853, 1
        %v1855 = vadd.f32 %v1853, %v1854
        %v1856 = vsel %vm347, %v1848, 0.0
        %v1857 = vrot.slane %v1856, 4
        %v1858 = vadd.f32 %v1856, %v1857
        %v1859 = vrot.slane %v1858, 2
        %v1860 = vadd.f32 %v1858, %v1859
        %v1861 = vrot.slane %v1860, 1
        %v1862 = vadd.f32 %v1860, %v1861
        %v1863 = vrcp.pop 4.0
        %v1864 = vmul.f32 %v1855, %v1863
        %v1865 = vmul.f32 %v1862, %v1863
        %v1866 = vsub.f32 %v1847, %v1864
        %v1867 = vsub.f32 %v1848, %v1865
        %v1868 = vmul.f32 %v1866, %v1866
        %v1869 = vmul.f32 %v1867, %v1867
        %v1870 = vsel %vm347, %v1868, 0.0
        %v1871 = vrot.slane %v1870, 4
        %v1872 = vadd.f32 %v1870, %v1871
        %v1873 = vrot.slane %v1872, 2
        %v1874 = vadd.f32 %v1872, %v1873
        %v1875 = vrot.slane %v1874, 1
        %v1876 = vadd.f32 %v1874, %v1875
        %v1877 = vsel %vm347, %v1869, 0.0
        %v1878 = vrot.slane %v1877, 4
        %v1879 = vadd.f32 %v1877, %v1878
        %v1880 = vrot.slane %v1879, 2
        %v1881 = vadd.f32 %v1879, %v1880
        %v1882 = vrot.slane %v1881, 1
        %v1883 = vadd.f32 %v1881, %v1882
        %v1884 = vmul.f32 %v1876, %v1863
        %v1885 = vmul.f32 %v1883, %v1863
        %v1886 = vadd.f32 %v1884, 1e-06
        %v1887 = vadd.f32 %v1885, 1e-06
        %v1888 = vrsqrt.pop %v1886
        %v1889 = vrsqrt.pop %v1887
        %v1890 = vmul.f32 %v1866, %v1888
        %v1891 = vmul.f32 %v1867, %v1889
        %v1892 = vld [vmem:[%s3] sm:$0xf]
        %v1893 = vld [vmem:[%s3 + $0x4] sm:$0xf]
        %v1894 = vpack.c.bf16 %v1890, %v1890
        %v1895 = vpack.c.bf16 %v1891, %v1891
        %v1896 = vld [vmem:[%s4] sm:$0xff]
        %v1897 = vld [vmem:[%s4 + $0x8] sm:$0xff]
        %1899 = vset.pattern.permute.xlu0 0
        %1900 = vperm.xlu0 %1899, %v1896
        %v1901 = vpop.permute.xlu0 %1900
        %1904 = vset.pattern.permute.xlu0 0
        %1905 = vperm.xlu0 %1904, %v1897
        %v1906 = vpop.permute.xlu0 %1905
        %v1910 = vunpack.c.l.b16 %v1892
        %v1911 = vunpack.c.l.b16 %v1893
        %v1912 = vpack.c.b16 %v1911, %v1910
        %vm1913 = vcmask 31744
        %v1915 = vsel %vm1913, %v1912, 0
        %vm1917 = vcmask 1041408
        %v1919 = vsel %vm1917, %v1894, 0
        %v1922 = vsel %vm1917, %v1895, 0
        %1924 = vmatprep.subr.bf16.mxu0 0
        %1925 = vmatpush1.bf16.msra.mxu0 0
        %1926 = vmatprep.subr.bf16.mxu0 0
        %1927 = vmatpush1.bf16.msra.mxu0 0
        %1928 = vmatprep.subr.bf16.mxu0 0
        %1929 = vmatpush1.bf16.msra.mxu0 0
        %1930 = vmatprep.subr.bf16.mxu0 0
        %1931 = vmatpush1.bf16.msra.mxu0 0
        %1932 = vmatprep.subr.bf16.mxu0 0
        %1933 = vmatpush1.bf16.msra.mxu0 0
        %1934 = vmatprep.subr.bf16.mxu0 0
        %1935 = vmatpush1.bf16.msra.mxu0 0
        %1936 = vmatprep.subr.bf16.mxu0 0
        %1937 = vmatpush1.bf16.msra.mxu0 0
        %1938 = vmatprep.subr.bf16.mxu0 %v1922
        %1939 = vmatpush1.bf16.msra.mxu0 %v1919
        %1940 = vmatprep.subr.bf16.mxu0 0
        %1941 = vmatpush2.bf16.msra.mxu0 0
        %1942 = vmatprep.subr.bf16.mxu0 0
        %1943 = vmatpush2.bf16.msra.mxu0 0
        %1944 = vmatprep.subr.bf16.mxu0 0
        %1945 = vmatpush2.bf16.msra.mxu0 0
        %1946 = vmatprep.subr.bf16.mxu0 0
        %1947 = vmatpush2.bf16.msra.mxu0 0
        %1948 = vmatprep.subr.bf16.mxu0 0
        %1949 = vmatpush2.bf16.msra.mxu0 0
        %1950 = vmatprep.subr.bf16.mxu0 0
        %1951 = vmatpush2.bf16.msra.mxu0 0
        %1952 = vmatprep.subr.bf16.mxu0 0
        %1953 = vmatpush2.bf16.msra.mxu0 0
        %1954 = vmatprep.subr.bf16.mxu0 0
        %1955 = vmatpush2.bf16.msra.mxu0 0
        %1956 = vmatprep.mubr.bf16.mxu0 0
        %1957 = vmatmul.mubr.bf16.gmra.mxu0 %v1915
        %v1958 = vpop.f32.mrf.mxu0
        %v1959 = vadd.f32 %v1901, %v1958
        %v1960 = vpop.f32.mrf.mxu0
        %v1961 = vadd.f32 %v1901, %v1960
        %v1962 = vpop.f32.mrf.mxu0
        %v1963 = vadd.f32 %v1906, %v1962
        %v1964 = vpop.f32.mrf.mxu0
        %v1965 = vadd.f32 %v1906, %v1964
        %1966 = vdwg.mxu0
        %v1967 = vmul.f32 %v1959, 0.5
        %v1968 = vmul.f32 %v1961, 0.5
        %v1969 = vmul.f32 %v1963, 0.5
        %v1970 = vmul.f32 %v1965, 0.5
        %v1971 = vmul.f32 %v1959, 0.70710677
        %v1972 = vmul.f32 %v1961, 0.70710677
        %v1973 = vmul.f32 %v1963, 0.70710677
        %v1974 = vmul.f32 %v1965, 0.70710677
        %v1975 = verf.f32.pop %v1971
        %v1976 = verf.f32.pop %v1972
        %v1977 = verf.f32.pop %v1973
        %v1978 = verf.f32.pop %v1974
        %v1979 = vadd.f32 %v1975, 1.0
        %v1980 = vadd.f32 %v1976, 1.0
        %v1981 = vadd.f32 %v1977, 1.0
        %v1982 = vadd.f32 %v1978, 1.0
        %v1983 = vmul.f32 %v1967, %v1979
        %v1984 = vmul.f32 %v1968, %v1980
        %v1985 = vmul.f32 %v1969, %v1981
        %v1986 = vmul.f32 %v1970, %v1982
        %v1987 = vld [vmem:[%s5] sm:$0x3]
        %v1988 = vpack.c.bf16 %v1985, %v1983
        %v1989 = vpack.c.bf16 %v1986, %v1984
        %v1990 = vld [vmem:[%s6] sm:$0xf]
        %1992 = vset.pattern.permute.xlu0 0
        %1993 = vperm.xlu0 %1992, %v1990
        %v1994 = vpop.permute.xlu0 %1993
        %vm1996 = vcmask 130048
        %v1998 = vsel %vm1996, %v1987, 0
        %2000 = vmatprep.subr.bf16.mxu0 0
        %2001 = vmatpush1.bf16.msra.mxu0 0
        %2002 = vmatprep.subr.bf16.mxu0 0
        %2003 = vmatpush1.bf16.msra.mxu0 0
        %2004 = vmatprep.subr.bf16.mxu0 0
        %2005 = vmatpush1.bf16.msra.mxu0 0
        %2006 = vmatprep.subr.bf16.mxu0 0
        %2007 = vmatpush1.bf16.msra.mxu0 0
        %2008 = vmatprep.subr.bf16.mxu0 0
        %2009 = vmatpush1.bf16.msra.mxu0 0
        %2010 = vmatprep.subr.bf16.mxu0 0
        %2011 = vmatpush1.bf16.msra.mxu0 0
        %2012 = vmatprep.subr.bf16.mxu0 0
        %2013 = vmatpush1.bf16.msra.mxu0 0
        %2014 = vmatprep.subr.bf16.mxu0 %v1989
        %2015 = vmatpush1.bf16.msra.mxu0 %v1988
        %2016 = vmatprep.subr.bf16.mxu0 0
        %2017 = vmatpush2.bf16.msra.mxu0 0
        %2018 = vmatprep.subr.bf16.mxu0 0
        %2019 = vmatpush2.bf16.msra.mxu0 0
        %2020 = vmatprep.subr.bf16.mxu0 0
        %2021 = vmatpush2.bf16.msra.mxu0 0
        %2022 = vmatprep.subr.bf16.mxu0 0
        %2023 = vmatpush2.bf16.msra.mxu0 0
        %2024 = vmatprep.subr.bf16.mxu0 0
        %2025 = vmatpush2.bf16.msra.mxu0 0
        %2026 = vmatprep.subr.bf16.mxu0 0
        %2027 = vmatpush2.bf16.msra.mxu0 0
        %2028 = vmatprep.subr.bf16.mxu0 0
        %2029 = vmatpush2.bf16.msra.mxu0 0
        %2030 = vmatprep.subr.bf16.mxu0 0
        %2031 = vmatpush2.bf16.msra.mxu0 0
        %2032 = vmatprep.mubr.bf16.mxu0 0
        %2033 = vmatmul.mubr.bf16.gmra.mxu0 %v1998
        %v2034 = vpop.f32.mrf.mxu0
        %v2035 = vadd.f32 %v1994, %v2034
        %v2036 = vpop.f32.mrf.mxu0
        %v2037 = vadd.f32 %v1994, %v2036
        %v2038 = vpop.f32.mrf.mxu0
        %v2039 = vpop.f32.mrf.mxu0
        %2040 = vdwg.mxu0
        %v2043 = vcombine.low %v2035, %v2037
        %v2045 = vadd.f32 %v278, %v2043
        %2046 = vst [vmem:[%s271] sm:$0xff] %v2045
        %s2047 = sand.u32 %s181, 1
        %s2048 = scalar_lea.sflag [#allocation4], %s2047
        %s2049 = sand.u32 %s181, 1
        %s2050 = smul.addr %s2049, 8
        %s2051 = scalar_lea.vmem [#allocation3], %s2050
        // Predicated region
        $region49: #{tpu_custom_call.1} parent=47 // pred_check
          %p2052 = pneg %p191
        $region50: #{tpu_custom_call.1} parent=47 // pred_check_branch
          %2054 = sbr.rel (%p2052) target = $region52
        $region51: #{tpu_custom_call.1} parent=47 // pred_region
          %s2056 = ssub.s32 128, 128
          %2057 = vsyncadd %s2048, %s2056
          %s2058 = smul.addr %s21, 2
          %s2059 = smul.addr %s2058, 64
          %s2060 = scalar_lea.hbm %s7, %s2059
          %s2062 = sshll.u32 %s2051, 4
          %s2063 = int_to_ptr.vmem [resolvable:$true] %s2062
          %2065 = dma.vmem_to_hbm [thread:$0]  %s2063, 128, %s2060, %s2048
        $region52: #{tpu_custom_call.1} parent=47 // pred_fallthru
          _
      $region48: #{tpu_custom_call.1} parent=5 // pred_fallthru
        _
      %p2066 = scmp.le.s32.totalorder 2, %s16
      // Predicated region
      $region53: #{tpu_custom_call.1} parent=5 // pred_check
        %p2067 = pneg %p2066
      $region54: #{tpu_custom_call.1} parent=5 // pred_check_branch
        %2069 = sbr.rel (%p2067) target = $region56
      $region55: #{tpu_custom_call.1} parent=5 // pred_region
        %s2070 = ssub.s32 %s16, 2
        // Predicated region
        $region57: #{tpu_custom_call.1} parent=55 // pred_check
          %p2071 = pneg %p197
        $region58: #{tpu_custom_call.1} parent=55 // pred_check_branch
          %2073 = sbr.rel (%p2071) target = $region60
        $region59: #{tpu_custom_call.1} parent=55 // pred_region
          %s2074 = sand.u32 %s182, 1
          %s2075 = scalar_lea.sflag [#allocation4], %s2074
          %s2076 = sand.u32 %s182, 1
          %s2077 = smul.addr %s2076, 8
          %s2078 = scalar_lea.vmem [#allocation3], %s2077
          %2079 = dma.done %s2075, 128
        $region60: #{tpu_custom_call.1} parent=55 // pred_fallthru
          _
      $region56: #{tpu_custom_call.1} parent=5 // pred_fallthru
        _
    $region6: #{tpu_custom_call.1} parent=1 // loop_footer
      %s20 = sadd.s32 1, %s16
    $region7: #{tpu_custom_call.1} parent=1 // loop_footer_branch
      %15 = sbr.rel target = $region3
    $region8: #{tpu_custom_call.1} parent=1 // loop_exit
      _
    %2080 = vsyncpa [#allocation4], 1
    %s2081 = scalar_lea.sflag [#allocation4], 1
    %2082 = vsyncpa %s2081, 1

</llo_original>
